<compile_context>
chip_gen: v7x
topology: tpu7x:2x2x1
jax: 0.10.0
libtpu: 0.0.40
codegen_flags: <defaults>
</compile_context>

<pallas_src>
import jax
import jax.numpy as jnp
from jax import lax
from jax.experimental import pallas as pl
from jax.experimental.pallas import tpu as pltpu

# ----------------------------- synthetic config -----------------------------
N_EMBED = 15                       # cfg.fe.n_embedding_features
N_IN = N_EMBED + 1                 # n_in_features (node feats + sup mass)
HL_FACTOR = 32                     # cfg.model.hl_factor
H = HL_FACTOR * 4                  # hidden width of the value heads (=128)
S_SUBGRAPH = (4,)                  # cfg.sac.s_subgraph
STD_BOUNDS = (0.1, 0.6)            # cfg.sac.diag_gaussian_actor.std_bounds
MU_BOUNDS = (-3.0, 3.0)            # cfg.sac.diag_gaussian_actor.mu_bounds
SAMPLE_OFFSET = 0.05               # cfg.sac.diag_gaussian_actor.sample_offset
INIT_TEMPERATURE = 10.0            # cfg.sac.init_temperature
MAX_EPISODE_LEN = 10.0             # cfg.trainer.max_episode_length
LRELU_SLOPE = 0.01                 # nn.LeakyReLU default
BN_EPS = 1e-5                      # nn.BatchNorm1d default

F2 = 2 * N_IN                      # two critic branches merged along lanes
H2 = 2 * H


# ----------------------------- in-kernel helpers -----------------------------
def _leaky(x):
    return jnp.where(x > 0, x, LRELU_SLOPE * x)


def _bn(x, gamma, beta):
    # BatchNorm1d(track_running_stats=False): batch statistics, biased var.
    # Per-column stats -> identical whether branches are split or lane-merged.
    mu = jnp.mean(x, axis=0, keepdims=True)
    var = jnp.mean((x - mu) ** 2, axis=0, keepdims=True)
    return (x - mu) * lax.rsqrt(var + BN_EPS) * gamma + beta


def _dot(a, b):
    # bf16 x bf16 -> f32 accumulate: MXU-native on v5e/v6e/v7x.
    return jnp.dot(a.astype(jnp.bfloat16), b.astype(jnp.bfloat16),
                   preferred_element_type=jnp.float32)


# ------------------------------- fused kernel --------------------------------
def _make_fused_kernel(n_scales, wrows, prows):
    """Fused actor + double-Q kernel.

    Ref order (inputs):  e_feat, eps, [pm_s]*n, wslab, w1s, w2s, pslab
    Ref order (outputs): actor_out [E2, 3] (mu|std|act), [q_s [G_s, 2]]*n
    """

    def kernel(*refs):
        it = iter(refs)
        e_ref, eps_ref = next(it), next(it)
        pm_refs = [next(it) for _ in range(n_scales)]
        wsl_ref, w1_ref, w2_ref, psl_ref = next(it), next(it), next(it), next(it)
        actor_ref = next(it)
        q_refs = [next(it) for _ in range(n_scales)]

        def wsl(r0, nrows, ncols):
            # static slice directly on the bf16 weight-slab ref
            return wsl_ref[r0:r0 + nrows, :ncols]

        def psl(name):
            # static slice directly on the f32 bias/BN-slab ref
            r, w = prows[name]
            return psl_ref[r:r + 1, :w]

        # ---- weights (bf16, one slab DMA + two head refs) ----
        aw1 = wsl(wrows["aw1"], N_IN, N_IN)
        aw2 = wsl(wrows["aw2"], N_IN, 2)
        wq = wsl(wrows["wq"], N_IN, F2)
        wgs = [wsl(wrows["wg"] + s * F2, F2, F2) for s in range(n_scales)]
        w3 = wsl(wrows["w3"], H, 2)                       # [H, 2]: col b = branch b
        w1a, w1b = w1_ref[0:N_IN, :], w1_ref[N_IN:2 * N_IN, :]   # [F, H] each
        w2a, w2b = w2_ref[0:H, :], w2_ref[H:2 * H, :]            # [H, H] each

        e = e_ref[...]                                    # [E2, F] f32
        eps = eps_ref[...]                                # [E2, 1] f32

        # ---- actor head (PolicyNet / Gcnn surrogate) + rsample ----
        h = _leaky(_dot(e, aw1) + psl("ab1"))
        o = _dot(h, aw2) + psl("ab2")                     # [E2, 2]
        mu = MU_BOUNDS[0] + 0.5 * (MU_BOUNDS[1] - MU_BOUNDS[0]) * (
            jnp.tanh(o[:, 0:1]) + 1.0)
        std = STD_BOUNDS[0] + 0.5 * (STD_BOUNDS[1] - STD_BOUNDS[0]) * (
            jnp.tanh(o[:, 1:2]) + 1.0)
        # TODO(synk): SigmNorm source not provided; rsample surrogate.
        z = mu + std * eps
        act = 0.5 * (jnp.tanh(0.5 * z) + 1.0) + SAMPLE_OFFSET    # sigmoid via EUP
        actor_ref[...] = jnp.concatenate([mu, std, act], axis=1)  # single store

        # ---- critic_tgt: shared per-edge embedding on the FULL edge set ----
        # Edge-wise ops commute with the subgraph gather; the gather + mean
        # pool is folded into the pm matmul below (no duplicate sub_e DMA,
        # no actor recompute, no quadratic iota/where pool matrix).
        x = e + act                                       # [E2, F]
        ef = _leaky(_dot(x, wq) + psl("bq"))              # [E2, 2F] lanes = b1|b2

        g1, be1, b1 = psl("g1"), psl("be1"), psl("b1")
        g2, be2, b2 = psl("g2"), psl("be2"), psl("b2")
        g3, be3, b3 = psl("g3"), psl("be3"), psl("b3")

        for s in range(n_scales):
            hg = _leaky(_dot(ef, wgs[s]) + psl(f"bg{s}"))  # [E2, 2F]
            # subgraph gather + per-subgraph mean pool as ONE matmul
            m = _dot(pm_refs[s][...], hg)                  # [G, 2F]
            # value head: (BN -> LeakyReLU -> Linear) x3; two narrow dots on
            # disjoint lane halves per layer (no block-diag zero weights).
            h1 = _leaky(_bn(m, g1, be1))                   # [G, 2F]
            y = jnp.concatenate([_dot(h1[:, :N_IN], w1a),
                                 _dot(h1[:, N_IN:], w1b)], axis=1) + b1   # [G, 2H]
            h2 = _leaky(_bn(y, g2, be2))
            y = jnp.concatenate([_dot(h2[:, :H], w2a),
                                 _dot(h2[:, H:], w2b)], axis=1) + b2      # [G, 2H]
            h3 = _leaky(_bn(y, g3, be3))
            q = jnp.concatenate([_dot(h3[:, :H], w3[:, 0:1]),
                                 _dot(h3[:, H:], w3[:, 1:2])], axis=1) + b3
            q_refs[s][...] = q                             # [G, 2] = (q1|q2)

    return kernel


# ------------------------- parameter merging / packing ------------------------
def _block_diag(a, b):
    r1, c1 = a.shape
    r2, c2 = b.shape
    top = jnp.concatenate([a, jnp.zeros((r1, c2), a.dtype)], axis=1)
    bot = jnp.concatenate([jnp.zeros((r2, c1), b.dtype), b], axis=1)
    return jnp.concatenate([top, bot], axis=0)


def prepare_params(params):
    """Pack/merge parameters for the fused kernel.

    Hoisted out of the per-step forward (perf review): call once per parameter
    update and reuse the result across environment steps."""
    a = params["actor"]
    br1 = params["critic_tgt"]["b1"]
    br2 = params["critic_tgt"]["b2"]
    n = len(S_SUBGRAPH)
    cat = lambda x, y: jnp.concatenate([x, y], axis=1)

    # --- bf16 weight slab (lane width 2F): aw1 | aw2 | wq | wg_bd[s]... | w3 ---
    def padw(w):
        return jnp.pad(w, ((0, 0), (0, F2 - w.shape[1])))

    wrows, blocks = {}, []
    r = 0

    def add(name, w):
        nonlocal r
        wrows[name] = r
        blocks.append(padw(w))
        r += w.shape[0]

    add("aw1", a["w1"])                                   # [F, F]
    add("aw2", a["w2"])                                   # [F, 2]
    add("wq", cat(br1["wq"], br2["wq"]))                  # [F, 2F]  (shared input)
    wrows["wg"] = r
    for i in range(n):
        wg_bd = _block_diag(br1["sg"][i]["wg"], br2["sg"][i]["wg"])   # [2F, 2F] tiny
        blocks.append(padw(wg_bd))
        r += wg_bd.shape[0]
    add("w3", cat(br1["head"]["w3"], br2["head"]["w3"]))  # [H, 2]
    wslab = jnp.concatenate(blocks, axis=0).astype(jnp.bfloat16)

    # --- head w1/w2 as stacked per-branch halves (NOT block-diagonal) ---
    w1s = jnp.concatenate([br1["head"]["w1"], br2["head"]["w1"]],
                          axis=0).astype(jnp.bfloat16)    # [2F, H]
    w2s = jnp.concatenate([br1["head"]["w2"], br2["head"]["w2"]],
                          axis=0).astype(jnp.bfloat16)    # [2H, H]

    # --- f32 small-params slab (lane width 2H): biases + BN params ---
    small = [("ab1", a["b1"]), ("ab2", a["b2"]),
             ("bq", cat(br1["bq"], br2["bq"]))]
    for i in range(n):
        small.append((f"bg{i}", cat(br1["sg"][i]["bg"], br2["sg"][i]["bg"])))
    h1, h2 = br1["head"], br2["head"]
    for nm in ("g1", "be1", "b1", "g2", "be2", "b2", "g3", "be3", "b3"):
        small.append((nm, cat(h1[nm], h2[nm])))
    prows, padded = {}, []
    for row, (nm, v) in enumerate(small):
        v = v.reshape(1, -1)
        prows[nm] = (row, v.shape[1])
        padded.append(jnp.pad(v, ((0, 0), (0, H2 - v.shape[1]))))
    pslab = jnp.concatenate(padded, axis=0)               # f32 [rows, 2H]

    return dict(wslab=wslab, w1s=w1s, w2s=w2s, pslab=pslab,
                wrows=wrows, prows=prows)


# ------------------------------ parameter init --------------------------------
def _init_linear(key, fan_in, fan_out, scale=0.1):
    kw, kb = jax.random.split(key)
    w = jax.random.normal(kw, (fan_in, fan_out), jnp.float32) * scale
    b = jax.random.normal(kb, (1, fan_out), jnp.float32) * scale
    return w, b


def _init_value_head(key):
    k1, k2, k3 = jax.random.split(key, 3)
    w1, b1 = _init_linear(k1, N_IN, H)
    w2, b2 = _init_linear(k2, H, H)
    w3, b3 = _init_linear(k3, H, 1)
    return dict(
        g1=jnp.ones((1, N_IN), jnp.float32), be1=jnp.zeros((1, N_IN), jnp.float32),
        w1=w1, b1=b1,
        g2=jnp.ones((1, H), jnp.float32), be2=jnp.zeros((1, H), jnp.float32),
        w2=w2, b2=b2,
        g3=jnp.ones((1, H), jnp.float32), be3=jnp.zeros((1, H), jnp.float32),
        w3=w3, b3=b3,
    )


def _init_critic_branch(key):
    kq, kg, kv = jax.random.split(key, 3)
    wq, bq = _init_linear(kq, N_IN, N_IN)
    sg_params = []
    for i, _ in enumerate(S_SUBGRAPH):
        wg, bg = _init_linear(jax.random.fold_in(kg, i), N_IN, N_IN)
        sg_params.append(dict(wg=wg, bg=bg))
    return dict(wq=wq, bq=bq, sg=sg_params, head=_init_value_head(kv))


def init_params(key):
    ka, k1, k2 = jax.random.split(key, 3)
    aw1, ab1 = _init_linear(jax.random.fold_in(ka, 0), N_IN, N_IN)
    aw2, ab2 = _init_linear(jax.random.fold_in(ka, 1), N_IN, 2)
    return dict(
        actor=dict(w1=aw1, b1=ab1, w2=aw2, b2=ab2),
        critic_tgt=dict(b1=_init_critic_branch(k1), b2=_init_critic_branch(k2)),
        log_alpha=jnp.full((len(S_SUBGRAPH),), jnp.log(INIT_TEMPERATURE),
                           jnp.float32),
    )


# --------------------------------- forward ------------------------------------
def _edge_features(node_features, edge_index):
    src, dst = edge_index[0], edge_index[1]
    return 0.5 * (jnp.take(node_features, src, axis=0)
                  + jnp.take(node_features, dst, axis=0))


def _gather_pool_matrix(idx, sg_size, e2):
    # P[g, e] = (1/sg) * |{p in group g : idx[p] == e}| — folds the subgraph
    # gather and the per-subgraph mean pool into one in-kernel MXU matmul.
    # Depends only on the subgraph structure; cacheable like prepare_params.
    g = idx.shape[0] // sg_size
    onehot = jax.nn.one_hot(idx, e2, dtype=jnp.float32)          # [Esub, E2]
    return (onehot.reshape(g, sg_size, e2).sum(axis=1) * (1.0 / sg_size)
            ).astype(jnp.bfloat16)                               # [G, E2]


def agent_forward(packed, state, rng):
    (node_features, edge_index, angles, sup_masses, sub_graphs,
     sep_subgraphs, round_n, gt_edges) = state
    node_features = jnp.concatenate([node_features, sup_masses], axis=1)
    round_n = round_n / MAX_EPISODE_LEN
    edge_index = jnp.concatenate(
        [edge_index, jnp.stack([edge_index[1], edge_index[0]], axis=0)], axis=1)

    # TODO(synk): Gcnn source not provided; edge features = mean of endpoint
    # node features (surrogate).
    e_feat = _edge_features(node_features, edge_index)        # [E2, F]
    e2 = e_feat.shape[0]
    eps = jax.random.normal(rng, (e2, 1), jnp.float32)

    n_scales = len(S_SUBGRAPH)
    pms, n_groups = [], []
    for i, sg_size in enumerate(S_SUBGRAPH):
        idx = sub_graphs[i]
        pms.append(_gather_pool_matrix(idx, sg_size, e2))
        n_groups.append(idx.shape[0] // sg_size)

    kernel = _make_fused_kernel(n_scales, packed["wrows"], packed["prows"])
    inputs = ([e_feat, eps] + pms
              + [packed["wslab"], packed["w1s"], packed["w2s"], packed["pslab"]])

    out_shapes = tuple(
        [jax.ShapeDtypeStruct((e2, 3), jnp.float32)]
        + [jax.ShapeDtypeStruct((g, 2), jnp.float32) for g in n_groups])

    vmem = lambda: pl.BlockSpec(memory_space=pltpu.MemorySpace.VMEM)
    # No grid: total footprint < 1 MiB, nothing to pipeline.
    # TODO(synk): once E2 grows, add a ("parallel",) edge-block grid axis for
    # the row-wise actor/edge-embedding portion (engages v7x's 2nd TensorCore);
    # size blocks <= ~16 MiB double-buffered on v7x, >= 512 rows on v6e/v5e.
    outs = pl.pallas_call(
        kernel,
        in_specs=[vmem() for _ in inputs],
        out_specs=tuple(vmem() for _ in out_shapes),
        out_shape=out_shapes,
    )(*inputs)

    actor_out = outs[0]
    mu, std, actions = actor_out[:, 0], actor_out[:, 1], actor_out[:, 2]
    q1 = [outs[1 + i][:, 0] for i in range(n_scales)]
    q2 = [outs[1 + i][:, 1] for i in range(n_scales)]

    actor_side_loss = jnp.float32(0.0)   # TODO(synk): Gcnn side loss unavailable
    critic_side_loss = jnp.float32(0.0)  # TODO(synk): GCN side losses unavailable
    side_loss = (actor_side_loss + critic_side_loss / 4.0) / 2.0
    # policy_opt=True path of Agent.forward: (dist, q1, q2, actions, side_loss)
    return (mu, std), q1, q2, actions, side_loss


# ----------------------------------- main --------------------------------------
if __name__ == "__main__":
    key = jax.random.PRNGKey(0)
    kx, km, ke, ka, kg = jax.random.split(key, 5)

    N_NODES = 12
    N_EDGES = 8                                   # before direction doubling
    E2 = 2 * N_EDGES                              # after doubling = 16

    node_features = jax.random.normal(kx, (N_NODES, N_EMBED), jnp.float32)
    sup_masses = jax.random.uniform(km, (N_NODES, 1), jnp.float32)
    edge_index = jax.random.randint(ke, (2, N_EDGES), 0, N_NODES, jnp.int32)
    angles = jax.random.normal(ka, (E2,), jnp.float32)        # unused by surrogate GCN
    gt_edges = jax.random.uniform(kg, (E2,), jnp.float32)     # unused by surrogate GCN
    sub_graphs = [jnp.arange(E2, dtype=jnp.int32)]            # 16 edges -> 4 groups of 4
    sep_subgraphs = [jnp.stack([jnp.arange(8, dtype=jnp.int32),
                                (jnp.arange(8, dtype=jnp.int32) + 1) % 8])]
    round_n = jnp.float32(3.0)

    state = (node_features, edge_index, angles, sup_masses, sub_graphs,
             sep_subgraphs, round_n, gt_edges)

    params = init_params(jax.random.PRNGKey(42))
    packed = prepare_params(params)               # hoisted: once per param update
    out = agent_forward(packed, state, jax.random.PRNGKey(7))
    jax.block_until_ready(out)
    print("KERNEL_OK")
</pallas_src>

<mosaic_0001>
module attributes {stable_mosaic.version = 11 : i64} {
  func.func @kernel(%arg0: memref<16x16xf32, #tpu.memory_space<vmem>>, %arg1: memref<16x1xf32, #tpu.memory_space<vmem>>, %arg2: memref<4x16xbf16, #tpu.memory_space<vmem>>, %arg3: memref<208x32xbf16, #tpu.memory_space<vmem>>, %arg4: memref<32x128xbf16, #tpu.memory_space<vmem>>, %arg5: memref<256x128xbf16, #tpu.memory_space<vmem>>, %arg6: memref<13x256xf32, #tpu.memory_space<vmem>>, %arg7: memref<16x3xf32, #tpu.memory_space<vmem>>, %arg8: memref<4x2xf32, #tpu.memory_space<vmem>>) attributes {dimension_semantics = [], scalar_prefetch = 0 : i64, scratch_operands = 0 : i64, tpu.core_type = #tpu.core_type<tc>} {
    %c0 = arith.constant 0 : index
    %c0_0 = arith.constant 0 : index
    %0 = vector.load %arg3[%c0, %c0_0] : memref<208x32xbf16, #tpu.memory_space<vmem>>, vector<16x16xbf16>
    %c16 = arith.constant 16 : index
    %c0_1 = arith.constant 0 : index
    %1 = vector.load %arg3[%c16, %c0_1] : memref<208x32xbf16, #tpu.memory_space<vmem>>, vector<16x2xbf16>
    %c32 = arith.constant 32 : index
    %c0_2 = arith.constant 0 : index
    %2 = vector.load %arg3[%c32, %c0_2] : memref<208x32xbf16, #tpu.memory_space<vmem>>, vector<16x32xbf16>
    %c48 = arith.constant 48 : index
    %c0_3 = arith.constant 0 : index
    %3 = vector.load %arg3[%c48, %c0_3] : memref<208x32xbf16, #tpu.memory_space<vmem>>, vector<32x32xbf16>
    %c80 = arith.constant 80 : index
    %c0_4 = arith.constant 0 : index
    %4 = vector.load %arg3[%c80, %c0_4] : memref<208x32xbf16, #tpu.memory_space<vmem>>, vector<128x2xbf16>
    %c0_5 = arith.constant 0 : index
    %c0_6 = arith.constant 0 : index
    %5 = vector.load %arg4[%c0_5, %c0_6] : memref<32x128xbf16, #tpu.memory_space<vmem>>, vector<16x128xbf16>
    %c16_7 = arith.constant 16 : index
    %c0_8 = arith.constant 0 : index
    %6 = vector.load %arg4[%c16_7, %c0_8] : memref<32x128xbf16, #tpu.memory_space<vmem>>, vector<16x128xbf16>
    %c0_9 = arith.constant 0 : index
    %c0_10 = arith.constant 0 : index
    %7 = vector.load %arg5[%c0_9, %c0_10] : memref<256x128xbf16, #tpu.memory_space<vmem>>, vector<128x128xbf16>
    %c128 = arith.constant 128 : index
    %c0_11 = arith.constant 0 : index
    %8 = vector.load %arg5[%c128, %c0_11] : memref<256x128xbf16, #tpu.memory_space<vmem>>, vector<128x128xbf16>
    %c0_12 = arith.constant 0 : index
    %c0_13 = arith.constant 0 : index
    %9 = vector.load %arg0[%c0_12, %c0_13] : memref<16x16xf32, #tpu.memory_space<vmem>>, vector<16x16xf32>
    %c0_14 = arith.constant 0 : index
    %c0_15 = arith.constant 0 : index
    %10 = vector.load %arg1[%c0_14, %c0_15] : memref<16x1xf32, #tpu.memory_space<vmem>>, vector<16x1xf32>
    %11 = arith.truncf %9 : vector<16x16xf32> to vector<16x16xbf16>
    %cst = arith.constant dense<0.000000e+00> : vector<16x16xf32>
    %12 = tpu.matmul %11, %0, %cst {dimension_numbers = #tpu.dot_dimension_numbers<[1], [0], [0], [1], [0, 0, 1, 1], [], []>} : vector<16x16xbf16>, vector<16x16xbf16>, vector<16x16xf32> -> vector<16x16xf32>
    %c0_16 = arith.constant 0 : index
    %c0_17 = arith.constant 0 : index
    %13 = vector.load %arg6[%c0_16, %c0_17] : memref<13x256xf32, #tpu.memory_space<vmem>>, vector<1x16xf32>
    %14 = vector.broadcast %13 : vector<1x16xf32> to vector<16x16xf32>
    %15 = arith.addf %12, %14 : vector<16x16xf32>
    %cst_18 = arith.constant 0.000000e+00 : f32
    %16 = vector.broadcast %cst_18 : f32 to vector<16x16xf32>
    %17 = arith.cmpf ogt, %15, %16 : vector<16x16xf32>
    %cst_19 = arith.constant 0.00999999977 : f32
    %18 = vector.broadcast %cst_19 : f32 to vector<16x16xf32>
    %19 = arith.mulf %18, %15 : vector<16x16xf32>
    %20 = arith.select %17, %15, %19 : vector<16x16xi1>, vector<16x16xf32>
    %21 = arith.truncf %20 : vector<16x16xf32> to vector<16x16xbf16>
    %cst_20 = arith.constant dense<0.000000e+00> : vector<16x2xf32>
    %22 = tpu.matmul %21, %1, %cst_20 {dimension_numbers = #tpu.dot_dimension_numbers<[1], [0], [0], [1], [0, 0, 1, 1], [], []>} : vector<16x16xbf16>, vector<16x2xbf16>, vector<16x2xf32> -> vector<16x2xf32>
    %c1 = arith.constant 1 : index
    %c0_21 = arith.constant 0 : index
    %23 = vector.load %arg6[%c1, %c0_21] : memref<13x256xf32, #tpu.memory_space<vmem>>, vector<1x2xf32>
    %24 = vector.broadcast %23 : vector<1x2xf32> to vector<16x2xf32>
    %25 = arith.addf %22, %24 : vector<16x2xf32>
    %26 = vector.extract_strided_slice %25 {offsets = [0, 0], sizes = [16, 1], strides = [1, 1]} : vector<16x2xf32> to vector<16x1xf32>
    %27 = math.tanh %26 : vector<16x1xf32>
    %cst_22 = arith.constant 1.000000e+00 : f32
    %28 = vector.broadcast %cst_22 : f32 to vector<16x1xf32>
    %29 = arith.addf %27, %28 : vector<16x1xf32>
    %cst_23 = arith.constant 3.000000e+00 : f32
    %30 = vector.broadcast %cst_23 : f32 to vector<16x1xf32>
    %31 = arith.mulf %30, %29 : vector<16x1xf32>
    %cst_24 = arith.constant -3.000000e+00 : f32
    %32 = vector.broadcast %cst_24 : f32 to vector<16x1xf32>
    %33 = arith.addf %32, %31 : vector<16x1xf32>
    %34 = vector.extract_strided_slice %25 {offsets = [0, 1], sizes = [16, 1], strides = [1, 1]} : vector<16x2xf32> to vector<16x1xf32>
    %35 = math.tanh %34 : vector<16x1xf32>
    %cst_25 = arith.constant 1.000000e+00 : f32
    %36 = vector.broadcast %cst_25 : f32 to vector<16x1xf32>
    %37 = arith.addf %35, %36 : vector<16x1xf32>
    %cst_26 = arith.constant 2.500000e-01 : f32
    %38 = vector.broadcast %cst_26 : f32 to vector<16x1xf32>
    %39 = arith.mulf %38, %37 : vector<16x1xf32>
    %cst_27 = arith.constant 1.000000e-01 : f32
    %40 = vector.broadcast %cst_27 : f32 to vector<16x1xf32>
    %41 = arith.addf %40, %39 : vector<16x1xf32>
    %42 = arith.mulf %41, %10 : vector<16x1xf32>
    %43 = arith.addf %33, %42 : vector<16x1xf32>
    %cst_28 = arith.constant 5.000000e-01 : f32
    %44 = vector.broadcast %cst_28 : f32 to vector<16x1xf32>
    %45 = arith.mulf %44, %43 : vector<16x1xf32>
    %46 = math.tanh %45 : vector<16x1xf32>
    %cst_29 = arith.constant 1.000000e+00 : f32
    %47 = vector.broadcast %cst_29 : f32 to vector<16x1xf32>
    %48 = arith.addf %46, %47 : vector<16x1xf32>
    %cst_30 = arith.constant 5.000000e-01 : f32
    %49 = vector.broadcast %cst_30 : f32 to vector<16x1xf32>
    %50 = arith.mulf %49, %48 : vector<16x1xf32>
    %cst_31 = arith.constant 5.000000e-02 : f32
    %51 = vector.broadcast %cst_31 : f32 to vector<16x1xf32>
    %52 = arith.addf %50, %51 : vector<16x1xf32>
    %53 = tpu.concatenate %33, %41, %52 in 1 : vector<16x1xf32>, vector<16x1xf32>, vector<16x1xf32> -> vector<16x3xf32>
    %c0_32 = arith.constant 0 : index
    %c0_33 = arith.constant 0 : index
    %54 = vector.load %arg7[%c0_32, %c0_33] : memref<16x3xf32, #tpu.memory_space<vmem>>, vector<16x3xf32>
    tpu.vector_store %arg7[%c0_32, %c0_33], %53 {strides = array<i32>} : memref<16x3xf32, #tpu.memory_space<vmem>>, vector<16x3xf32>,
    %55 = vector.broadcast %52 : vector<16x1xf32> to vector<16x16xf32>
    %56 = arith.addf %9, %55 : vector<16x16xf32>
    %57 = arith.truncf %56 : vector<16x16xf32> to vector<16x16xbf16>
    %cst_34 = arith.constant dense<0.000000e+00> : vector<16x32xf32>
    %58 = tpu.matmul %57, %2, %cst_34 {dimension_numbers = #tpu.dot_dimension_numbers<[1], [0], [0], [1], [0, 0, 1, 1], [], []>} : vector<16x16xbf16>, vector<16x32xbf16>, vector<16x32xf32> -> vector<16x32xf32>
    %c2 = arith.constant 2 : index
    %c0_35 = arith.constant 0 : index
    %59 = vector.load %arg6[%c2, %c0_35] : memref<13x256xf32, #tpu.memory_space<vmem>>, vector<1x32xf32>
    %60 = vector.broadcast %59 : vector<1x32xf32> to vector<16x32xf32>
    %61 = arith.addf %58, %60 : vector<16x32xf32>
    %cst_36 = arith.constant 0.000000e+00 : f32
    %62 = vector.broadcast %cst_36 : f32 to vector<16x32xf32>
    %63 = arith.cmpf ogt, %61, %62 : vector<16x32xf32>
    %cst_37 = arith.constant 0.00999999977 : f32
    %64 = vector.broadcast %cst_37 : f32 to vector<16x32xf32>
    %65 = arith.mulf %64, %61 : vector<16x32xf32>
    %66 = arith.select %63, %61, %65 : vector<16x32xi1>, vector<16x32xf32>
    %c4 = arith.constant 4 : index
    %c0_38 = arith.constant 0 : index
    %67 = vector.load %arg6[%c4, %c0_38] : memref<13x256xf32, #tpu.memory_space<vmem>>, vector<1x32xf32>
    %c5 = arith.constant 5 : index
    %c0_39 = arith.constant 0 : index
    %68 = vector.load %arg6[%c5, %c0_39] : memref<13x256xf32, #tpu.memory_space<vmem>>, vector<1x32xf32>
    %c6 = arith.constant 6 : index
    %c0_40 = arith.constant 0 : index
    %69 = vector.load %arg6[%c6, %c0_40] : memref<13x256xf32, #tpu.memory_space<vmem>>, vector<1x256xf32>
    %c7 = arith.constant 7 : index
    %c0_41 = arith.constant 0 : index
    %70 = vector.load %arg6[%c7, %c0_41] : memref<13x256xf32, #tpu.memory_space<vmem>>, vector<1x256xf32>
    %c8 = arith.constant 8 : index
    %c0_42 = arith.constant 0 : index
    %71 = vector.load %arg6[%c8, %c0_42] : memref<13x256xf32, #tpu.memory_space<vmem>>, vector<1x256xf32>
    %c9 = arith.constant 9 : index
    %c0_43 = arith.constant 0 : index
    %72 = vector.load %arg6[%c9, %c0_43] : memref<13x256xf32, #tpu.memory_space<vmem>>, vector<1x256xf32>
    %c10 = arith.constant 10 : index
    %c0_44 = arith.constant 0 : index
    %73 = vector.load %arg6[%c10, %c0_44] : memref<13x256xf32, #tpu.memory_space<vmem>>, vector<1x256xf32>
    %c11 = arith.constant 11 : index
    %c0_45 = arith.constant 0 : index
    %74 = vector.load %arg6[%c11, %c0_45] : memref<13x256xf32, #tpu.memory_space<vmem>>, vector<1x256xf32>
    %c12 = arith.constant 12 : index
    %c0_46 = arith.constant 0 : index
    %75 = vector.load %arg6[%c12, %c0_46] : memref<13x256xf32, #tpu.memory_space<vmem>>, vector<1x2xf32>
    %76 = arith.truncf %66 : vector<16x32xf32> to vector<16x32xbf16>
    %cst_47 = arith.constant dense<0.000000e+00> : vector<16x32xf32>
    %77 = tpu.matmul %76, %3, %cst_47 {dimension_numbers = #tpu.dot_dimension_numbers<[1], [0], [0], [1], [0, 0, 1, 1], [], []>} : vector<16x32xbf16>, vector<32x32xbf16>, vector<16x32xf32> -> vector<16x32xf32>
    %c3 = arith.constant 3 : index
    %c0_48 = arith.constant 0 : index
    %78 = vector.load %arg6[%c3, %c0_48] : memref<13x256xf32, #tpu.memory_space<vmem>>, vector<1x32xf32>
    %79 = vector.broadcast %78 : vector<1x32xf32> to vector<16x32xf32>
    %80 = arith.addf %77, %79 : vector<16x32xf32>
    %cst_49 = arith.constant 0.000000e+00 : f32
    %81 = vector.broadcast %cst_49 : f32 to vector<16x32xf32>
    %82 = arith.cmpf ogt, %80, %81 : vector<16x32xf32>
    %cst_50 = arith.constant 0.00999999977 : f32
    %83 = vector.broadcast %cst_50 : f32 to vector<16x32xf32>
    %84 = arith.mulf %83, %80 : vector<16x32xf32>
    %85 = arith.select %82, %80, %84 : vector<16x32xi1>, vector<16x32xf32>
    %c0_51 = arith.constant 0 : index
    %c0_52 = arith.constant 0 : index
    %86 = vector.load %arg2[%c0_51, %c0_52] : memref<4x16xbf16, #tpu.memory_space<vmem>>, vector<4x16xbf16>
    %87 = arith.truncf %85 : vector<16x32xf32> to vector<16x32xbf16>
    %cst_53 = arith.constant dense<0.000000e+00> : vector<4x32xf32>
    %88 = tpu.matmul %86, %87, %cst_53 {dimension_numbers = #tpu.dot_dimension_numbers<[1], [0], [0], [1], [0, 0, 1, 1], [], []>} : vector<4x16xbf16>, vector<16x32xbf16>, vector<4x32xf32> -> vector<4x32xf32>
    %cst_54 = arith.constant dense<0.000000e+00> : vector<32xf32>
    %89 = vector.multi_reduction <add>, %88, %cst_54 [0] : vector<4x32xf32> to vector<32xf32>
    %90 = vector.shape_cast %89 : vector<32xf32> to vector<1x32xf32>
    %cst_55 = arith.constant 4.000000e+00 : f32
    %91 = vector.broadcast %cst_55 : f32 to vector<1x32xf32>
    %92 = arith.divf %90, %91 : vector<1x32xf32>
    %93 = vector.broadcast %92 : vector<1x32xf32> to vector<4x32xf32>
    %94 = arith.subf %88, %93 : vector<4x32xf32>
    %95 = arith.mulf %94, %94 : vector<4x32xf32>
    %cst_56 = arith.constant dense<0.000000e+00> : vector<32xf32>
    %96 = vector.multi_reduction <add>, %95, %cst_56 [0] : vector<4x32xf32> to vector<32xf32>
    %97 = vector.shape_cast %96 : vector<32xf32> to vector<1x32xf32>
    %cst_57 = arith.constant 4.000000e+00 : f32
    %98 = vector.broadcast %cst_57 : f32 to vector<1x32xf32>
    %99 = arith.divf %97, %98 : vector<1x32xf32>
    %100 = vector.broadcast %92 : vector<1x32xf32> to vector<4x32xf32>
    %101 = arith.subf %88, %100 : vector<4x32xf32>
    %cst_58 = arith.constant 9.99999974E-6 : f32
    %102 = vector.broadcast %cst_58 : f32 to vector<1x32xf32>
    %103 = arith.addf %99, %102 : vector<1x32xf32>
    %104 = math.rsqrt %103 : vector<1x32xf32>
    %105 = vector.broadcast %104 : vector<1x32xf32> to vector<4x32xf32>
    %106 = arith.mulf %101, %105 : vector<4x32xf32>
    %107 = vector.broadcast %67 : vector<1x32xf32> to vector<4x32xf32>
    %108 = arith.mulf %106, %107 : vector<4x32xf32>
    %109 = vector.broadcast %68 : vector<1x32xf32> to vector<4x32xf32>
    %110 = arith.addf %108, %109 : vector<4x32xf32>
    %cst_59 = arith.constant 0.000000e+00 : f32
    %111 = vector.broadcast %cst_59 : f32 to vector<4x32xf32>
    %112 = arith.cmpf ogt, %110, %111 : vector<4x32xf32>
    %cst_60 = arith.constant 0.00999999977 : f32
    %113 = vector.broadcast %cst_60 : f32 to vector<4x32xf32>
    %114 = arith.mulf %113, %110 : vector<4x32xf32>
    %115 = arith.select %112, %110, %114 : vector<4x32xi1>, vector<4x32xf32>
    %116 = vector.extract_strided_slice %115 {offsets = [0, 0], sizes = [4, 16], strides = [1, 1]} : vector<4x32xf32> to vector<4x16xf32>
    %117 = arith.truncf %116 : vector<4x16xf32> to vector<4x16xbf16>
    %cst_61 = arith.constant dense<0.000000e+00> : vector<4x128xf32>
    %118 = tpu.matmul %117, %5, %cst_61 {dimension_numbers = #tpu.dot_dimension_numbers<[1], [0], [0], [1], [0, 0, 1, 1], [], []>} : vector<4x16xbf16>, vector<16x128xbf16>, vector<4x128xf32> -> vector<4x128xf32>
    %119 = vector.extract_strided_slice %115 {offsets = [0, 16], sizes = [4, 16], strides = [1, 1]} : vector<4x32xf32> to vector<4x16xf32>
    %120 = arith.truncf %119 : vector<4x16xf32> to vector<4x16xbf16>
    %cst_62 = arith.constant dense<0.000000e+00> : vector<4x128xf32>
    %121 = tpu.matmul %120, %6, %cst_62 {dimension_numbers = #tpu.dot_dimension_numbers<[1], [0], [0], [1], [0, 0, 1, 1], [], []>} : vector<4x16xbf16>, vector<16x128xbf16>, vector<4x128xf32> -> vector<4x128xf32>
    %122 = tpu.concatenate %118, %121 in 1 : vector<4x128xf32>, vector<4x128xf32> -> vector<4x256xf32>
    %123 = vector.broadcast %69 : vector<1x256xf32> to vector<4x256xf32>
    %124 = arith.addf %122, %123 : vector<4x256xf32>
    %cst_63 = arith.constant dense<0.000000e+00> : vector<256xf32>
    %125 = vector.multi_reduction <add>, %124, %cst_63 [0] : vector<4x256xf32> to vector<256xf32>
    %126 = vector.shape_cast %125 : vector<256xf32> to vector<1x256xf32>
    %cst_64 = arith.constant 4.000000e+00 : f32
    %127 = vector.broadcast %cst_64 : f32 to vector<1x256xf32>
    %128 = arith.divf %126, %127 : vector<1x256xf32>
    %129 = vector.broadcast %128 : vector<1x256xf32> to vector<4x256xf32>
    %130 = arith.subf %124, %129 : vector<4x256xf32>
    %131 = arith.mulf %130, %130 : vector<4x256xf32>
    %cst_65 = arith.constant dense<0.000000e+00> : vector<256xf32>
    %132 = vector.multi_reduction <add>, %131, %cst_65 [0] : vector<4x256xf32> to vector<256xf32>
    %133 = vector.shape_cast %132 : vector<256xf32> to vector<1x256xf32>
    %cst_66 = arith.constant 4.000000e+00 : f32
    %134 = vector.broadcast %cst_66 : f32 to vector<1x256xf32>
    %135 = arith.divf %133, %134 : vector<1x256xf32>
    %136 = vector.broadcast %128 : vector<1x256xf32> to vector<4x256xf32>
    %137 = arith.subf %124, %136 : vector<4x256xf32>
    %cst_67 = arith.constant 9.99999974E-6 : f32
    %138 = vector.broadcast %cst_67 : f32 to vector<1x256xf32>
    %139 = arith.addf %135, %138 : vector<1x256xf32>
    %140 = math.rsqrt %139 : vector<1x256xf32>
    %141 = vector.broadcast %140 : vector<1x256xf32> to vector<4x256xf32>
    %142 = arith.mulf %137, %141 : vector<4x256xf32>
    %143 = vector.broadcast %70 : vector<1x256xf32> to vector<4x256xf32>
    %144 = arith.mulf %142, %143 : vector<4x256xf32>
    %145 = vector.broadcast %71 : vector<1x256xf32> to vector<4x256xf32>
    %146 = arith.addf %144, %145 : vector<4x256xf32>
    %cst_68 = arith.constant 0.000000e+00 : f32
    %147 = vector.broadcast %cst_68 : f32 to vector<4x256xf32>
    %148 = arith.cmpf ogt, %146, %147 : vector<4x256xf32>
    %cst_69 = arith.constant 0.00999999977 : f32
    %149 = vector.broadcast %cst_69 : f32 to vector<4x256xf32>
    %150 = arith.mulf %149, %146 : vector<4x256xf32>
    %151 = arith.select %148, %146, %150 : vector<4x256xi1>, vector<4x256xf32>
    %152 = vector.extract_strided_slice %151 {offsets = [0, 0], sizes = [4, 128], strides = [1, 1]} : vector<4x256xf32> to vector<4x128xf32>
    %153 = arith.truncf %152 : vector<4x128xf32> to vector<4x128xbf16>
    %cst_70 = arith.constant dense<0.000000e+00> : vector<4x128xf32>
    %154 = tpu.matmul %153, %7, %cst_70 {dimension_numbers = #tpu.dot_dimension_numbers<[1], [0], [0], [1], [0, 0, 1, 1], [], []>} : vector<4x128xbf16>, vector<128x128xbf16>, vector<4x128xf32> -> vector<4x128xf32>
    %155 = vector.extract_strided_slice %151 {offsets = [0, 128], sizes = [4, 128], strides = [1, 1]} : vector<4x256xf32> to vector<4x128xf32>
    %156 = arith.truncf %155 : vector<4x128xf32> to vector<4x128xbf16>
    %cst_71 = arith.constant dense<0.000000e+00> : vector<4x128xf32>
    %157 = tpu.matmul %156, %8, %cst_71 {dimension_numbers = #tpu.dot_dimension_numbers<[1], [0], [0], [1], [0, 0, 1, 1], [], []>} : vector<4x128xbf16>, vector<128x128xbf16>, vector<4x128xf32> -> vector<4x128xf32>
    %158 = tpu.concatenate %154, %157 in 1 : vector<4x128xf32>, vector<4x128xf32> -> vector<4x256xf32>
    %159 = vector.broadcast %72 : vector<1x256xf32> to vector<4x256xf32>
    %160 = arith.addf %158, %159 : vector<4x256xf32>
    %cst_72 = arith.constant dense<0.000000e+00> : vector<256xf32>
    %161 = vector.multi_reduction <add>, %160, %cst_72 [0] : vector<4x256xf32> to vector<256xf32>
    %162 = vector.shape_cast %161 : vector<256xf32> to vector<1x256xf32>
    %cst_73 = arith.constant 4.000000e+00 : f32
    %163 = vector.broadcast %cst_73 : f32 to vector<1x256xf32>
    %164 = arith.divf %162, %163 : vector<1x256xf32>
    %165 = vector.broadcast %164 : vector<1x256xf32> to vector<4x256xf32>
    %166 = arith.subf %160, %165 : vector<4x256xf32>
    %167 = arith.mulf %166, %166 : vector<4x256xf32>
    %cst_74 = arith.constant dense<0.000000e+00> : vector<256xf32>
    %168 = vector.multi_reduction <add>, %167, %cst_74 [0] : vector<4x256xf32> to vector<256xf32>
    %169 = vector.shape_cast %168 : vector<256xf32> to vector<1x256xf32>
    %cst_75 = arith.constant 4.000000e+00 : f32
    %170 = vector.broadcast %cst_75 : f32 to vector<1x256xf32>
    %171 = arith.divf %169, %170 : vector<1x256xf32>
    %172 = vector.broadcast %164 : vector<1x256xf32> to vector<4x256xf32>
    %173 = arith.subf %160, %172 : vector<4x256xf32>
    %cst_76 = arith.constant 9.99999974E-6 : f32
    %174 = vector.broadcast %cst_76 : f32 to vector<1x256xf32>
    %175 = arith.addf %171, %174 : vector<1x256xf32>
    %176 = math.rsqrt %175 : vector<1x256xf32>
    %177 = vector.broadcast %176 : vector<1x256xf32> to vector<4x256xf32>
    %178 = arith.mulf %173, %177 : vector<4x256xf32>
    %179 = vector.broadcast %73 : vector<1x256xf32> to vector<4x256xf32>
    %180 = arith.mulf %178, %179 : vector<4x256xf32>
    %181 = vector.broadcast %74 : vector<1x256xf32> to vector<4x256xf32>
    %182 = arith.addf %180, %181 : vector<4x256xf32>
    %cst_77 = arith.constant 0.000000e+00 : f32
    %183 = vector.broadcast %cst_77 : f32 to vector<4x256xf32>
    %184 = arith.cmpf ogt, %182, %183 : vector<4x256xf32>
    %cst_78 = arith.constant 0.00999999977 : f32
    %185 = vector.broadcast %cst_78 : f32 to vector<4x256xf32>
    %186 = arith.mulf %185, %182 : vector<4x256xf32>
    %187 = arith.select %184, %182, %186 : vector<4x256xi1>, vector<4x256xf32>
    %188 = vector.extract_strided_slice %187 {offsets = [0, 0], sizes = [4, 128], strides = [1, 1]} : vector<4x256xf32> to vector<4x128xf32>
    %189 = vector.extract_strided_slice %4 {offsets = [0, 0], sizes = [128, 1], strides = [1, 1]} : vector<128x2xbf16> to vector<128x1xbf16>
    %190 = arith.truncf %188 : vector<4x128xf32> to vector<4x128xbf16>
    %cst_79 = arith.constant dense<0.000000e+00> : vector<4x1xf32>
    %191 = tpu.matmul %190, %189, %cst_79 {dimension_numbers = #tpu.dot_dimension_numbers<[1], [0], [0], [1], [0, 0, 1, 1], [], []>} : vector<4x128xbf16>, vector<128x1xbf16>, vector<4x1xf32> -> vector<4x1xf32>
    %192 = vector.extract_strided_slice %187 {offsets = [0, 128], sizes = [4, 128], strides = [1, 1]} : vector<4x256xf32> to vector<4x128xf32>
    %193 = vector.extract_strided_slice %4 {offsets = [0, 1], sizes = [128, 1], strides = [1, 1]} : vector<128x2xbf16> to vector<128x1xbf16>
    %194 = arith.truncf %192 : vector<4x128xf32> to vector<4x128xbf16>
    %cst_80 = arith.constant dense<0.000000e+00> : vector<4x1xf32>
    %195 = tpu.matmul %194, %193, %cst_80 {dimension_numbers = #tpu.dot_dimension_numbers<[1], [0], [0], [1], [0, 0, 1, 1], [], []>} : vector<4x128xbf16>, vector<128x1xbf16>, vector<4x1xf32> -> vector<4x1xf32>
    %196 = tpu.concatenate %191, %195 in 1 : vector<4x1xf32>, vector<4x1xf32> -> vector<4x2xf32>
    %197 = vector.broadcast %75 : vector<1x2xf32> to vector<4x2xf32>
    %198 = arith.addf %196, %197 : vector<4x2xf32>
    %c0_81 = arith.constant 0 : index
    %c0_82 = arith.constant 0 : index
    %199 = vector.load %arg8[%c0_81, %c0_82] : memref<4x2xf32, #tpu.memory_space<vmem>>, vector<4x2xf32>
    tpu.vector_store %arg8[%c0_81, %c0_82], %198 {strides = array<i32>} : memref<4x2xf32, #tpu.memory_space<vmem>>, vector<4x2xf32>,
    return
  }
}

</mosaic_0001>

<llo_original>
// kernel: tpu_custom_call.1
$region0: #{tpu_custom_call.1}
  #allocation0 [shape = 'u32[]', space=smem, size = 0x4, offset = 0x4, fixed_abs, tag = 'smem constant byte address 0x4 - core index']
  #allocation1 [shape = 'u32[144,128]{1,0:T(1,128)}', space=vmem, size = 0x12000, scoped, tag = 'internal scratch']
  %s0 = inlined_call_operand.hbm [shape: f32[16,16], index: 0, kind: input, shape index: {}]
  %s1 = inlined_call_operand.vmem [shape: f32[16,1], index: 1, kind: input, shape index: {}]
  %s2 = inlined_call_operand.vmem [shape: bf16[4,16], index: 2, kind: input, shape index: {}]
  %s3 = inlined_call_operand.vmem [shape: bf16[208,32], index: 3, kind: input, shape index: {}]
  %s4 = inlined_call_operand.hbm [shape: bf16[32,128], index: 4, kind: input, shape index: {}]
  %s5 = inlined_call_operand.vmem [shape: bf16[256,128], index: 5, kind: input, shape index: {}]
  %s6 = inlined_call_operand.vmem [shape: f32[13,256], index: 6, kind: input, shape index: {}]
  %s7 = inlined_call_operand.vmem [shape: f32[16,3], index: 7, kind: output, shape index: {0}]
  %s8 = inlined_call_operand.vmem [shape: f32[4,2], index: 8, kind: output, shape index: {1}]
  %9 = xla_tuple %s7, %s8
  %s10 = sld [smem:[#allocation0]]
  $region54: #{tpu_custom_call.1} parent=0
    _
  %s12 = ssub.s32 1, %s10
  %s13 = scalar_select 0, %s12, %s10
  $region1: #{tpu_custom_call.1} parent=0
    #allocation2 [shape = 'u8[8192]{0}', space=vmem, size = 0x2000, scoped, tag = 'input window, operand 0, single buffered']
    #allocation3 [shape = 's32[1]{0}', space=sflag, size = 0x4, scoped, tag = 'scoped memory for tpu_custom_call.1']
    #allocation4 [shape = 'u8[8192]{0}', space=vmem, size = 0x2000, scoped, tag = 'input window, operand 4, single buffered']
    #allocation5 [shape = 's32[1]{0}', space=sflag, size = 0x4, scoped, tag = 'scoped memory for tpu_custom_call.1']
    %14 = vsyncpa [#allocation3], 0
    %15 = vsyncpa [#allocation5], 0
    // Predicated region
    $region2: #{tpu_custom_call.1} parent=1 // pred_check
      _
    $region3: #{tpu_custom_call.1} parent=1 // pred_check_branch
      %17 = sbr.rel (0) target = $region5
    $region4: #{tpu_custom_call.1} parent=1 // pred_region
      %s19 = ssub.s32 256, 256
      %20 = vsyncadd [#allocation3], %s19
      %s21 = sshll.u32 [#allocation2], 4
      %s22 = int_to_ptr.vmem [resolvable:$true] %s21
      %27 = dma.hbm_to_vmem [thread:$0]  %s0, 256, %s22, [#allocation3], 128, 128, 8
    $region5: #{tpu_custom_call.1} parent=1 // pred_fallthru
      _
    // Predicated region
    $region6: #{tpu_custom_call.1} parent=1 // pred_check
      _
    $region7: #{tpu_custom_call.1} parent=1 // pred_check_branch
      %29 = sbr.rel (0) target = $region9
    $region8: #{tpu_custom_call.1} parent=1 // pred_region
      _
    $region9: #{tpu_custom_call.1} parent=1 // pred_fallthru
      _
    // Predicated region
    $region10: #{tpu_custom_call.1} parent=1 // pred_check
      _
    $region11: #{tpu_custom_call.1} parent=1 // pred_check_branch
      %31 = sbr.rel (0) target = $region13
    $region12: #{tpu_custom_call.1} parent=1 // pred_region
      _
    $region13: #{tpu_custom_call.1} parent=1 // pred_fallthru
      _
    // Predicated region
    $region14: #{tpu_custom_call.1} parent=1 // pred_check
      _
    $region15: #{tpu_custom_call.1} parent=1 // pred_check_branch
      %33 = sbr.rel (0) target = $region17
    $region16: #{tpu_custom_call.1} parent=1 // pred_region
      _
    $region17: #{tpu_custom_call.1} parent=1 // pred_fallthru
      _
    // Predicated region
    $region18: #{tpu_custom_call.1} parent=1 // pred_check
      _
    $region19: #{tpu_custom_call.1} parent=1 // pred_check_branch
      %35 = sbr.rel (0) target = $region21
    $region20: #{tpu_custom_call.1} parent=1 // pred_region
      %s37 = ssub.s32 256, 256
      %38 = vsyncadd [#allocation5], %s37
      %s39 = sshll.u32 [#allocation4], 4
      %s40 = int_to_ptr.vmem [resolvable:$true] %s39
      %45 = dma.hbm_to_vmem [thread:$0]  %s4, 256, %s40, [#allocation5], 64, 64, 4
    $region21: #{tpu_custom_call.1} parent=1 // pred_fallthru
      _
    // Predicated region
    $region22: #{tpu_custom_call.1} parent=1 // pred_check
      _
    $region23: #{tpu_custom_call.1} parent=1 // pred_check_branch
      %47 = sbr.rel (0) target = $region25
    $region24: #{tpu_custom_call.1} parent=1 // pred_region
      _
    $region25: #{tpu_custom_call.1} parent=1 // pred_fallthru
      _
    // Predicated region
    $region26: #{tpu_custom_call.1} parent=1 // pred_check
      _
    $region27: #{tpu_custom_call.1} parent=1 // pred_check_branch
      %49 = sbr.rel (0) target = $region29
    $region28: #{tpu_custom_call.1} parent=1 // pred_region
      _
    $region29: #{tpu_custom_call.1} parent=1 // pred_fallthru
      _
    // Predicated region
    $region30: #{tpu_custom_call.1} parent=1 // pred_check
      _
    $region31: #{tpu_custom_call.1} parent=1 // pred_check_branch
      %51 = sbr.rel (0) target = $region33
    $region32: #{tpu_custom_call.1} parent=1 // pred_region
      %52 = dma.done [#allocation3], 256
    $region33: #{tpu_custom_call.1} parent=1 // pred_fallthru
      _
    // Predicated region
    $region34: #{tpu_custom_call.1} parent=1 // pred_check
      _
    $region35: #{tpu_custom_call.1} parent=1 // pred_check_branch
      %54 = sbr.rel (0) target = $region37
    $region36: #{tpu_custom_call.1} parent=1 // pred_region
      %55 = dma.done [#allocation5], 256
    $region37: #{tpu_custom_call.1} parent=1 // pred_fallthru
      _
    %v57 = vld [vmem:[%s3] sm:$0xf]
    %v58 = vld [vmem:[%s3 + $0x4] sm:$0xf]
    %v59 = vld [vmem:[%s3 + $0x8] sm:$0xf]
    %v60 = vld [vmem:[%s3 + $0xc] sm:$0xf]
    %v61 = vld [vmem:[%s3 + $0x10] sm:$0xf]
    %v62 = vld [vmem:[%s3 + $0x14] sm:$0xf]
    %v63 = vld [vmem:[%s3 + $0x18] sm:$0xf]
    %v64 = vld [vmem:[%s3 + $0x1c] sm:$0xf]
    %v65 = vld [vmem:[%s3 + $0x20] sm:$0xf]
    %v66 = vld [vmem:[%s3 + $0x24] sm:$0xf]
    %v67 = vld [vmem:[%s3 + $0x28] sm:$0xf]
    %v68 = vld [vmem:[%s3 + $0x2c] sm:$0xf]
    %v69 = vld [vmem:[%s3 + $0x30] sm:$0xf]
    %v70 = vld [vmem:[%s3 + $0x34] sm:$0xf]
    %v71 = vld [vmem:[%s3 + $0x38] sm:$0xf]
    %v72 = vld [vmem:[%s3 + $0x3c] sm:$0xf]
    %v73 = vld [vmem:[%s3 + $0x40] sm:$0xf]
    %v74 = vld [vmem:[%s3 + $0x44] sm:$0xf]
    %v75 = vld [vmem:[%s3 + $0x48] sm:$0xf]
    %v76 = vld [vmem:[%s3 + $0x4c] sm:$0xf]
    %v77 = vld [vmem:[%s3 + $0x50] sm:$0xf]
    %v78 = vld [vmem:[%s3 + $0x54] sm:$0xf]
    %v79 = vld [vmem:[%s3 + $0x58] sm:$0xf]
    %v80 = vld [vmem:[%s3 + $0x5c] sm:$0xf]
    %v81 = vld [vmem:[%s3 + $0x60] sm:$0xf]
    %v82 = vld [vmem:[%s3 + $0x64] sm:$0xf]
    %v83 = vld [vmem:[#allocation4] sm:$0xf]
    %v84 = vld [vmem:[#allocation4 + $0x4] sm:$0xf]
    %v85 = vld [vmem:[#allocation4 + $0x8] sm:$0xf]
    %v86 = vld [vmem:[#allocation4 + $0xc] sm:$0xf]
    %v87 = vld [vmem:[%s5] sm:$0xf]
    %v88 = vld [vmem:[%s5 + $0x4] sm:$0xf]
    %v89 = vld [vmem:[%s5 + $0x8] sm:$0xf]
    %v90 = vld [vmem:[%s5 + $0xc] sm:$0xf]
    %v91 = vld [vmem:[%s5 + $0x10] sm:$0xf]
    %v92 = vld [vmem:[%s5 + $0x14] sm:$0xf]
    %v93 = vld [vmem:[%s5 + $0x18] sm:$0xf]
    %v94 = vld [vmem:[%s5 + $0x1c] sm:$0xf]
    %v95 = vld [vmem:[%s5 + $0x20] sm:$0xf]
    %v96 = vld [vmem:[%s5 + $0x24] sm:$0xf]
    %v97 = vld [vmem:[%s5 + $0x28] sm:$0xf]
    %v98 = vld [vmem:[%s5 + $0x2c] sm:$0xf]
    %v99 = vld [vmem:[%s5 + $0x30] sm:$0xf]
    %v100 = vld [vmem:[%s5 + $0x34] sm:$0xf]
    %v101 = vld [vmem:[%s5 + $0x38] sm:$0xf]
    %v102 = vld [vmem:[%s5 + $0x3c] sm:$0xf]
    %v103 = vld [vmem:[%s5 + $0x40] sm:$0xf]
    %v104 = vld [vmem:[%s5 + $0x44] sm:$0xf]
    %v105 = vld [vmem:[%s5 + $0x48] sm:$0xf]
    %v106 = vld [vmem:[%s5 + $0x4c] sm:$0xf]
    %v107 = vld [vmem:[%s5 + $0x50] sm:$0xf]
    %v108 = vld [vmem:[%s5 + $0x54] sm:$0xf]
    %v109 = vld [vmem:[%s5 + $0x58] sm:$0xf]
    %v110 = vld [vmem:[%s5 + $0x5c] sm:$0xf]
    %v111 = vld [vmem:[%s5 + $0x60] sm:$0xf]
    %v112 = vld [vmem:[%s5 + $0x64] sm:$0xf]
    %v113 = vld [vmem:[%s5 + $0x68] sm:$0xf]
    %v114 = vld [vmem:[%s5 + $0x6c] sm:$0xf]
    %v115 = vld [vmem:[%s5 + $0x70] sm:$0xf]
    %v116 = vld [vmem:[%s5 + $0x74] sm:$0xf]
    %v117 = vld [vmem:[%s5 + $0x78] sm:$0xf]
    %v118 = vld [vmem:[%s5 + $0x7c] sm:$0xf]
    %v119 = vld [vmem:[#allocation2] sm:$0xff]
    %v120 = vld [vmem:[#allocation2 + $0x8] sm:$0xff]
    %v121 = vld [vmem:[%s1] sm:$0xff]
    %v122 = vld [vmem:[%s1 + $0x8] sm:$0xff]
    %v123 = vpack.c.bf16 %v120, %v119
    %v124 = vld [vmem:[%s6] ss:$0 sm:$0xff]
    %v127 = vunpack.c.l.b16 %v57
    %v128 = vunpack.c.l.b16 %v58
    %v129 = vpack.c.b16 %v128, %v127
    %vm131 = vcmask 130048
    %v133 = vsel %vm131, %v123, 0
    %135 = vmatprep.subr.bf16.mxu0 0
    %136 = vmatpush1.bf16.msra.mxu0 %v129
    %137 = vmatprep.subr.bf16.mxu0 0
    %138 = vmatpush1.bf16.msra.mxu0 0
    %139 = vmatprep.subr.bf16.mxu0 0
    %140 = vmatpush1.bf16.msra.mxu0 0
    %141 = vmatprep.subr.bf16.mxu0 0
    %142 = vmatpush1.bf16.msra.mxu0 0
    %143 = vmatprep.subr.bf16.mxu0 0
    %144 = vmatpush1.bf16.msra.mxu0 0
    %145 = vmatprep.subr.bf16.mxu0 0
    %146 = vmatpush1.bf16.msra.mxu0 0
    %147 = vmatprep.subr.bf16.mxu0 0
    %148 = vmatpush1.bf16.msra.mxu0 0
    %149 = vmatprep.subr.bf16.mxu0 0
    %150 = vmatpush1.bf16.msra.mxu0 0
    %151 = vmatprep.subr.bf16.mxu0 0
    %152 = vmatpush1.bf16.msra.mxu0 0
    %153 = vmatprep.subr.bf16.mxu0 0
    %154 = vmatpush1.bf16.msra.mxu0 0
    %155 = vmatprep.subr.bf16.mxu0 0
    %156 = vmatpush1.bf16.msra.mxu0 0
    %157 = vmatprep.subr.bf16.mxu0 0
    %158 = vmatpush1.bf16.msra.mxu0 0
    %159 = vmatprep.subr.bf16.mxu0 0
    %160 = vmatpush1.bf16.msra.mxu0 0
    %161 = vmatprep.subr.bf16.mxu0 0
    %162 = vmatpush1.bf16.msra.mxu0 0
    %163 = vmatprep.subr.bf16.mxu0 0
    %164 = vmatpush1.bf16.msra.mxu0 0
    %165 = vmatprep.subr.bf16.mxu0 0
    %166 = vmatpush1.bf16.msra.mxu0 0
    %167 = vmatprep.mubr.bf16.mxu0 0
    %168 = vmatmul.mubr.bf16.gmra.mrb[0].mxu0 %v133
    %v169 = vpop.f32.mrb[0].mxu0
    %v170 = vadd.f32 %v124, %v169
    %v171 = vpop.f32.mrb[0].mxu0
    %v172 = vpop.f32.mrb[0].mxu0
    %v173 = vadd.f32 %v124, %v172
    %v174 = vpop.f32.mrb[0].mxu0
    %175 = vdwg.mxu0
    %vm176 = vcmp.gt.f32.partialorder %v170, 0.0
    %vm177 = vcmp.gt.f32.partialorder %v173, 0.0
    %v178 = vmul.f32 %v170, 0.01
    %v179 = vmul.f32 %v173, 0.01
    %v180 = vsel %vm176, %v170, %v178
    %v181 = vsel %vm177, %v173, %v179
    %v182 = vpack.c.bf16 %v181, %v180
    %v183 = vld [vmem:[%s6 + $0x1] ss:$0 sm:$0xff]
    %v186 = vunpack.c.l.b16 %v59
    %v187 = vunpack.c.l.b16 %v60
    %v188 = vpack.c.b16 %v187, %v186
    %v191 = vsel %vm131, %v182, 0
    %193 = vmatprep.subr.bf16.mxu0 0
    %194 = vmatpush1.bf16.msra.mxu0 %v188
    %195 = vmatprep.subr.bf16.mxu0 0
    %196 = vmatpush1.bf16.msra.mxu0 0
    %197 = vmatprep.subr.bf16.mxu0 0
    %198 = vmatpush1.bf16.msra.mxu0 0
    %199 = vmatprep.subr.bf16.mxu0 0
    %200 = vmatpush1.bf16.msra.mxu0 0
    %201 = vmatprep.subr.bf16.mxu0 0
    %202 = vmatpush1.bf16.msra.mxu0 0
    %203 = vmatprep.subr.bf16.mxu0 0
    %204 = vmatpush1.bf16.msra.mxu0 0
    %205 = vmatprep.subr.bf16.mxu0 0
    %206 = vmatpush1.bf16.msra.mxu0 0
    %207 = vmatprep.subr.bf16.mxu0 0
    %208 = vmatpush1.bf16.msra.mxu0 0
    %209 = vmatprep.subr.bf16.mxu0 0
    %210 = vmatpush1.bf16.msra.mxu0 0
    %211 = vmatprep.subr.bf16.mxu0 0
    %212 = vmatpush1.bf16.msra.mxu0 0
    %213 = vmatprep.subr.bf16.mxu0 0
    %214 = vmatpush1.bf16.msra.mxu0 0
    %215 = vmatprep.subr.bf16.mxu0 0
    %216 = vmatpush1.bf16.msra.mxu0 0
    %217 = vmatprep.subr.bf16.mxu0 0
    %218 = vmatpush1.bf16.msra.mxu0 0
    %219 = vmatprep.subr.bf16.mxu0 0
    %220 = vmatpush1.bf16.msra.mxu0 0
    %221 = vmatprep.subr.bf16.mxu0 0
    %222 = vmatpush1.bf16.msra.mxu0 0
    %223 = vmatprep.subr.bf16.mxu0 0
    %224 = vmatpush1.bf16.msra.mxu0 0
    %225 = vmatprep.mubr.bf16.mxu0 0
    %226 = vmatmul.mubr.bf16.gmra.mrb[0].mxu0 %v191
    %v227 = vpop.f32.mrb[0].mxu0
    %v228 = vadd.f32 %v183, %v227
    %v229 = vpop.f32.mrb[0].mxu0
    %v230 = vpop.f32.mrb[0].mxu0
    %v231 = vadd.f32 %v183, %v230
    %v232 = vpop.f32.mrb[0].mxu0
    %233 = vdwg.mxu0
    %v234 = vtanh.pop %v228
    %v235 = vtanh.pop %v231
    %v236 = vadd.f32 %v234, 1.0
    %v237 = vadd.f32 %v235, 1.0
    %v238 = vmul.f32 %v236, 3.0
    %v239 = vmul.f32 %v237, 3.0
    %v240 = vadd.f32 %v238, -3.0
    %v241 = vadd.f32 %v239, -3.0
    %v242 = vmul.f32 %v236, 0.25
    %v243 = vmul.f32 %v237, 0.25
    %v244 = vadd.f32 %v242, 0.1
    %v245 = vadd.f32 %v243, 0.1
    %248 = vrot.lane.b32.xlu0 %v121, 1
    %v249 = vpop.permute.xlu0 %248
    %250 = vrot.lane.b32.xlu0 %v122, 1
    %v251 = vpop.permute.xlu0 %250
    %v254 = vmul.f32 %v244, %v249
    %v255 = vmul.f32 %v245, %v251
    %258 = vrot.lane.b32.xlu0 %v254, 127
    %v259 = vpop.permute.xlu0 %258
    %260 = vrot.lane.b32.xlu0 %v255, 127
    %v261 = vpop.permute.xlu0 %260
    %v264 = vadd.f32 %v240, %v259
    %v265 = vadd.f32 %v241, %v261
    %v266 = vmul.f32 %v264, 0.5
    %v267 = vmul.f32 %v265, 0.5
    %v268 = vtanh.pop %v266
    %v269 = vtanh.pop %v267
    %v270 = vadd.f32 %v268, 1.0
    %v271 = vadd.f32 %v269, 1.0
    %v272 = vmul.f32 %v270, 0.5
    %v273 = vmul.f32 %v271, 0.5
    %v274 = vadd.f32 %v272, 0.05
    %v275 = vadd.f32 %v273, 0.05
    %278 = vrot.lane.b32.xlu0 %v274, 2
    %v279 = vpop.permute.xlu0 %278
    %280 = vrot.lane.b32.xlu0 %v275, 2
    %v281 = vpop.permute.xlu0 %280
    %vm284 = vcmask 7168
    %v285 = vsel %vm284, %v240, %v244
    %v286 = vsel %vm284, %v241, %v245
    %vm287 = vcmask 15360
    %v288 = vsel %vm287, %v285, %v279
    %v289 = vsel %vm287, %v286, %v281
    %vm290 = vcmask 23552
    %291 = vst.msk [vmem:[%s7] sm:$0xff] %vm290, %v288
    %292 = vst.msk [vmem:[%s7 + $0x8] sm:$0xff] %vm290, %v289
    %293 = vset.pattern.permute.xlu0 0
    %294 = vperm.xlu0 %293, %v274
    %v295 = vpop.permute.xlu0 %294
    %297 = vset.pattern.permute.xlu0 0
    %298 = vperm.xlu0 %297, %v275
    %v299 = vpop.permute.xlu0 %298
    %v301 = vadd.f32 %v119, %v295
    %v302 = vadd.f32 %v120, %v299
    %v303 = vpack.c.bf16 %v302, %v301
    %v304 = vld [vmem:[%s6 + $0x2] ss:$0 sm:$0xff]
    %v307 = vunpack.c.l.b16 %v61
    %v308 = vunpack.c.l.b16 %v62
    %v309 = vpack.c.b16 %v308, %v307
    %v312 = vsel %vm131, %v303, 0
    %314 = vmatprep.subr.bf16.mxu0 0
    %315 = vmatpush1.bf16.msra.mxu0 %v309
    %316 = vmatprep.subr.bf16.mxu0 0
    %317 = vmatpush1.bf16.msra.mxu0 0
    %318 = vmatprep.subr.bf16.mxu0 0
    %319 = vmatpush1.bf16.msra.mxu0 0
    %320 = vmatprep.subr.bf16.mxu0 0
    %321 = vmatpush1.bf16.msra.mxu0 0
    %322 = vmatprep.subr.bf16.mxu0 0
    %323 = vmatpush1.bf16.msra.mxu0 0
    %324 = vmatprep.subr.bf16.mxu0 0
    %325 = vmatpush1.bf16.msra.mxu0 0
    %326 = vmatprep.subr.bf16.mxu0 0
    %327 = vmatpush1.bf16.msra.mxu0 0
    %328 = vmatprep.subr.bf16.mxu0 0
    %329 = vmatpush1.bf16.msra.mxu0 0
    %330 = vmatprep.subr.bf16.mxu0 0
    %331 = vmatpush1.bf16.msra.mxu0 0
    %332 = vmatprep.subr.bf16.mxu0 0
    %333 = vmatpush1.bf16.msra.mxu0 0
    %334 = vmatprep.subr.bf16.mxu0 0
    %335 = vmatpush1.bf16.msra.mxu0 0
    %336 = vmatprep.subr.bf16.mxu0 0
    %337 = vmatpush1.bf16.msra.mxu0 0
    %338 = vmatprep.subr.bf16.mxu0 0
    %339 = vmatpush1.bf16.msra.mxu0 0
    %340 = vmatprep.subr.bf16.mxu0 0
    %341 = vmatpush1.bf16.msra.mxu0 0
    %342 = vmatprep.subr.bf16.mxu0 0
    %343 = vmatpush1.bf16.msra.mxu0 0
    %344 = vmatprep.subr.bf16.mxu0 0
    %345 = vmatpush1.bf16.msra.mxu0 0
    %346 = vmatprep.mubr.bf16.mxu0 0
    %347 = vmatmul.mubr.bf16.gmra.mrb[0].mxu0 %v312
    %v348 = vpop.f32.mrb[0].mxu0
    %v349 = vadd.f32 %v304, %v348
    %v350 = vpop.f32.mrb[0].mxu0
    %v351 = vpop.f32.mrb[0].mxu0
    %v352 = vadd.f32 %v304, %v351
    %v353 = vpop.f32.mrb[0].mxu0
    %354 = vdwg.mxu0
    %vm355 = vcmp.gt.f32.partialorder %v349, 0.0
    %vm356 = vcmp.gt.f32.partialorder %v352, 0.0
    %v357 = vmul.f32 %v349, 0.01
    %v358 = vmul.f32 %v352, 0.01
    %v359 = vsel %vm355, %v349, %v357
    %v360 = vsel %vm356, %v352, %v358
    %v361 = vld [vmem:[%s6 + $0x4] ss:$0 sm:$0xff]
    %v362 = vld [vmem:[%s6 + $0x5] ss:$0 sm:$0xff]
    %s363 = scalar_lea.vmem %s6, 6
    %v364 = vld [vmem:[%s363] ss:$8 sm:$0x3]
    %s365 = scalar_lea.vmem %s6, 7
    %v366 = vld [vmem:[%s365] ss:$8 sm:$0x3]
    %s367 = scalar_lea.vmem %s6, 16
    %v368 = vld [vmem:[%s367] ss:$8 sm:$0x3]
    %s369 = scalar_lea.vmem %s6, 17
    %v370 = vld [vmem:[%s369] ss:$8 sm:$0x3]
    %s371 = scalar_lea.vmem %s6, 18
    %v372 = vld [vmem:[%s371] ss:$8 sm:$0x3]
    %s373 = scalar_lea.vmem %s6, 19
    %v374 = vld [vmem:[%s373] ss:$8 sm:$0x3]
    %v375 = vld [vmem:[%s6 + $0x14] ss:$0 sm:$0xff]
    %v376 = vpack.c.bf16 %v360, %v359
    %v377 = vld [vmem:[%s6 + $0x3] ss:$0 sm:$0xff]
    %v382 = vunpack.c.l.b16 %v63
    %v383 = vunpack.c.l.b16 %v64
    %v384 = vunpack.c.l.b16 %v65
    %v385 = vunpack.c.l.b16 %v66
    %v386 = vpack.c.b16 %v383, %v382
    %v387 = vpack.c.b16 %v385, %v384
    %vm390 = vcmask 261120
    %v392 = vsel %vm390, %v376, 0
    %394 = vmatprep.subr.bf16.mxu0 0
    %395 = vmatpush1.bf16.msra.mxu0 %v386
    %396 = vmatprep.subr.bf16.mxu0 0
    %397 = vmatpush1.bf16.msra.mxu0 %v387
    %398 = vmatprep.subr.bf16.mxu0 0
    %399 = vmatpush1.bf16.msra.mxu0 0
    %400 = vmatprep.subr.bf16.mxu0 0
    %401 = vmatpush1.bf16.msra.mxu0 0
    %402 = vmatprep.subr.bf16.mxu0 0
    %403 = vmatpush1.bf16.msra.mxu0 0
    %404 = vmatprep.subr.bf16.mxu0 0
    %405 = vmatpush1.bf16.msra.mxu0 0
    %406 = vmatprep.subr.bf16.mxu0 0
    %407 = vmatpush1.bf16.msra.mxu0 0
    %408 = vmatprep.subr.bf16.mxu0 0
    %409 = vmatpush1.bf16.msra.mxu0 0
    %410 = vmatprep.subr.bf16.mxu0 0
    %411 = vmatpush1.bf16.msra.mxu0 0
    %412 = vmatprep.subr.bf16.mxu0 0
    %413 = vmatpush1.bf16.msra.mxu0 0
    %414 = vmatprep.subr.bf16.mxu0 0
    %415 = vmatpush1.bf16.msra.mxu0 0
    %416 = vmatprep.subr.bf16.mxu0 0
    %417 = vmatpush1.bf16.msra.mxu0 0
    %418 = vmatprep.subr.bf16.mxu0 0
    %419 = vmatpush1.bf16.msra.mxu0 0
    %420 = vmatprep.subr.bf16.mxu0 0
    %421 = vmatpush1.bf16.msra.mxu0 0
    %422 = vmatprep.subr.bf16.mxu0 0
    %423 = vmatpush1.bf16.msra.mxu0 0
    %424 = vmatprep.subr.bf16.mxu0 0
    %425 = vmatpush1.bf16.msra.mxu0 0
    %426 = vmatprep.mubr.bf16.mxu0 0
    %427 = vmatmul.mubr.bf16.gmra.mrb[0].mxu0 %v392
    %v428 = vpop.f32.mrb[0].mxu0
    %v429 = vadd.f32 %v377, %v428
    %v430 = vpop.f32.mrb[0].mxu0
    %v431 = vpop.f32.mrb[0].mxu0
    %v432 = vadd.f32 %v377, %v431
    %v433 = vpop.f32.mrb[0].mxu0
    %434 = vdwg.mxu0
    %vm435 = vcmp.gt.f32.partialorder %v429, 0.0
    %vm436 = vcmp.gt.f32.partialorder %v432, 0.0
    %v437 = vmul.f32 %v429, 0.01
    %v438 = vmul.f32 %v432, 0.01
    %v439 = vsel %vm435, %v429, %v437
    %v440 = vsel %vm436, %v432, %v438
    %v441 = vld [vmem:[%s2] sm:$0x3]
    %v442 = vpack.c.bf16 %v440, %v439
    %v444 = vsel %vm131, %v441, 0
    %446 = vmatprep.subr.bf16.mxu0 0
    %447 = vmatpush1.bf16.msra.mxu0 %v442
    %448 = vmatprep.subr.bf16.mxu0 0
    %449 = vmatpush1.bf16.msra.mxu0 0
    %450 = vmatprep.subr.bf16.mxu0 0
    %451 = vmatpush1.bf16.msra.mxu0 0
    %452 = vmatprep.subr.bf16.mxu0 0
    %453 = vmatpush1.bf16.msra.mxu0 0
    %454 = vmatprep.subr.bf16.mxu0 0
    %455 = vmatpush1.bf16.msra.mxu0 0
    %456 = vmatprep.subr.bf16.mxu0 0
    %457 = vmatpush1.bf16.msra.mxu0 0
    %458 = vmatprep.subr.bf16.mxu0 0
    %459 = vmatpush1.bf16.msra.mxu0 0
    %460 = vmatprep.subr.bf16.mxu0 0
    %461 = vmatpush1.bf16.msra.mxu0 0
    %462 = vmatprep.subr.bf16.mxu0 0
    %463 = vmatpush1.bf16.msra.mxu0 0
    %464 = vmatprep.subr.bf16.mxu0 0
    %465 = vmatpush1.bf16.msra.mxu0 0
    %466 = vmatprep.subr.bf16.mxu0 0
    %467 = vmatpush1.bf16.msra.mxu0 0
    %468 = vmatprep.subr.bf16.mxu0 0
    %469 = vmatpush1.bf16.msra.mxu0 0
    %470 = vmatprep.subr.bf16.mxu0 0
    %471 = vmatpush1.bf16.msra.mxu0 0
    %472 = vmatprep.subr.bf16.mxu0 0
    %473 = vmatpush1.bf16.msra.mxu0 0
    %474 = vmatprep.subr.bf16.mxu0 0
    %475 = vmatpush1.bf16.msra.mxu0 0
    %476 = vmatprep.subr.bf16.mxu0 0
    %477 = vmatpush1.bf16.msra.mxu0 0
    %478 = vmatprep.mubr.bf16.mxu0 0
    %479 = vmatmul.mubr.bf16.gmra.mrb[0].mxu0 %v444
    %v480 = vpop.f32.mrb[0].mxu0
    %v481 = vadd.f32 0.0, %v480
    %v482 = vpop.f32.mrb[0].mxu0
    %v483 = vpop.f32.mrb[0].mxu0
    %v484 = vpop.f32.mrb[0].mxu0
    %485 = vdwg.mxu0
    %vm486 = vcmask 257024
    %v487 = vsel %vm486, %v481, 0.0
    %v488 = vrot.slane %v487, 4
    %v489 = vadd.f32 %v487, %v488
    %v490 = vrot.slane %v489, 2
    %v491 = vadd.f32 %v489, %v490
    %v492 = vrot.slane %v491, 1
    %v493 = vadd.f32 %v491, %v492
    %v494 = vrcp.pop 4.0
    %v495 = vmul.f32 %v493, %v494
    %v496 = vsub.f32 %v481, %v495
    %v497 = vmul.f32 %v496, %v496
    %v498 = vsel %vm486, %v497, 0.0
    %v499 = vrot.slane %v498, 4
    %v500 = vadd.f32 %v498, %v499
    %v501 = vrot.slane %v500, 2
    %v502 = vadd.f32 %v500, %v501
    %v503 = vrot.slane %v502, 1
    %v504 = vadd.f32 %v502, %v503
    %v505 = vmul.f32 %v504, %v494
    %v506 = vadd.f32 %v505, 1e-05
    %v507 = vrsqrt.pop %v506
    %v508 = vmul.f32 %v496, %v507
    %v509 = vmul.f32 %v508, %v361
    %v510 = vadd.f32 %v509, %v362
    %vm511 = vcmp.gt.f32.partialorder %v510, 0.0
    %v512 = vmul.f32 %v510, 0.01
    %v513 = vsel %vm511, %v510, %v512
    %v514 = vpack.c.bf16 %v513, %v513
    %v517 = vunpack.c.l.b16 %v83
    %v518 = vunpack.c.l.b16 %v84
    %v519 = vpack.c.b16 %v518, %v517
    %v522 = vsel %vm131, %v514, 0
    %524 = vmatprep.subr.bf16.mxu0 0
    %525 = vmatpush1.bf16.msra.mxu0 %v519
    %526 = vmatprep.subr.bf16.mxu0 0
    %527 = vmatpush1.bf16.msra.mxu0 0
    %528 = vmatprep.subr.bf16.mxu0 0
    %529 = vmatpush1.bf16.msra.mxu0 0
    %530 = vmatprep.subr.bf16.mxu0 0
    %531 = vmatpush1.bf16.msra.mxu0 0
    %532 = vmatprep.subr.bf16.mxu0 0
    %533 = vmatpush1.bf16.msra.mxu0 0
    %534 = vmatprep.subr.bf16.mxu0 0
    %535 = vmatpush1.bf16.msra.mxu0 0
    %536 = vmatprep.subr.bf16.mxu0 0
    %537 = vmatpush1.bf16.msra.mxu0 0
    %538 = vmatprep.subr.bf16.mxu0 0
    %539 = vmatpush1.bf16.msra.mxu0 0
    %540 = vmatprep.subr.bf16.mxu0 0
    %541 = vmatpush1.bf16.msra.mxu0 0
    %542 = vmatprep.subr.bf16.mxu0 0
    %543 = vmatpush1.bf16.msra.mxu0 0
    %544 = vmatprep.subr.bf16.mxu0 0
    %545 = vmatpush1.bf16.msra.mxu0 0
    %546 = vmatprep.subr.bf16.mxu0 0
    %547 = vmatpush1.bf16.msra.mxu0 0
    %548 = vmatprep.subr.bf16.mxu0 0
    %549 = vmatpush1.bf16.msra.mxu0 0
    %550 = vmatprep.subr.bf16.mxu0 0
    %551 = vmatpush1.bf16.msra.mxu0 0
    %552 = vmatprep.subr.bf16.mxu0 0
    %553 = vmatpush1.bf16.msra.mxu0 0
    %554 = vmatprep.subr.bf16.mxu0 0
    %555 = vmatpush1.bf16.msra.mxu0 0
    %556 = vmatprep.mubr.bf16.mxu0 0
    %557 = vmatmul.mubr.bf16.gmra.mrb[0].mxu0 %v522
    %v558 = vpop.f32.mrb[0].mxu0
    %v559 = vadd.f32 0.0, %v558
    %v560 = vpop.f32.mrb[0].mxu0
    %v561 = vpop.f32.mrb[0].mxu0
    %v562 = vpop.f32.mrb[0].mxu0
    %563 = vdwg.mxu0
    %565 = vrot.lane.b32.xlu0 %v514, 112
    %v566 = vpop.permute.xlu0 %565
    %v569 = vunpack.c.l.b16 %v85
    %v570 = vunpack.c.l.b16 %v86
    %v571 = vpack.c.b16 %v570, %v569
    %v574 = vsel %vm131, %v566, 0
    %576 = vmatprep.subr.bf16.mxu0 0
    %577 = vmatpush1.bf16.msra.mxu0 %v571
    %578 = vmatprep.subr.bf16.mxu0 0
    %579 = vmatpush1.bf16.msra.mxu0 0
    %580 = vmatprep.subr.bf16.mxu0 0
    %581 = vmatpush1.bf16.msra.mxu0 0
    %582 = vmatprep.subr.bf16.mxu0 0
    %583 = vmatpush1.bf16.msra.mxu0 0
    %584 = vmatprep.subr.bf16.mxu0 0
    %585 = vmatpush1.bf16.msra.mxu0 0
    %586 = vmatprep.subr.bf16.mxu0 0
    %587 = vmatpush1.bf16.msra.mxu0 0
    %588 = vmatprep.subr.bf16.mxu0 0
    %589 = vmatpush1.bf16.msra.mxu0 0
    %590 = vmatprep.subr.bf16.mxu0 0
    %591 = vmatpush1.bf16.msra.mxu0 0
    %592 = vmatprep.subr.bf16.mxu0 0
    %593 = vmatpush1.bf16.msra.mxu0 0
    %594 = vmatprep.subr.bf16.mxu0 0
    %595 = vmatpush1.bf16.msra.mxu0 0
    %596 = vmatprep.subr.bf16.mxu0 0
    %597 = vmatpush1.bf16.msra.mxu0 0
    %598 = vmatprep.subr.bf16.mxu0 0
    %599 = vmatpush1.bf16.msra.mxu0 0
    %600 = vmatprep.subr.bf16.mxu0 0
    %601 = vmatpush1.bf16.msra.mxu0 0
    %602 = vmatprep.subr.bf16.mxu0 0
    %603 = vmatpush1.bf16.msra.mxu0 0
    %604 = vmatprep.subr.bf16.mxu0 0
    %605 = vmatpush1.bf16.msra.mxu0 0
    %606 = vmatprep.subr.bf16.mxu0 0
    %607 = vmatpush1.bf16.msra.mxu0 0
    %608 = vmatprep.mubr.bf16.mxu0 0
    %609 = vmatmul.mubr.bf16.gmra.mrb[0].mxu0 %v574
    %v610 = vpop.f32.mrb[0].mxu0
    %v611 = vadd.f32 0.0, %v610
    %v612 = vpop.f32.mrb[0].mxu0
    %v613 = vpop.f32.mrb[0].mxu0
    %v614 = vpop.f32.mrb[0].mxu0
    %615 = vdwg.mxu0
    %v617 = vlaneseq
    %v618 = vshrl.u32 %v617, 7
    %v619 = vsub.s32 0, %v618
    %v620 = vrot.slane %v364, %v619
    %v621 = vlaneseq
    %v622 = vshrl.u32 %v621, 7
    %v623 = vsub.s32 1, %v622
    %v624 = vrot.slane %v364, %v623
    %v627 = vadd.f32 %v559, %v620
    %v628 = vadd.f32 %v611, %v624
    %vm629 = vcmask 1043456
    %v630 = vsel %vm629, %v627, 0.0
    %v631 = vrot.slane %v630, 4
    %v632 = vadd.f32 %v630, %v631
    %v633 = vrot.slane %v632, 2
    %v634 = vadd.f32 %v632, %v633
    %v635 = vrot.slane %v634, 1
    %v636 = vadd.f32 %v634, %v635
    %v637 = vsel %vm629, %v628, 0.0
    %v638 = vrot.slane %v637, 4
    %v639 = vadd.f32 %v637, %v638
    %v640 = vrot.slane %v639, 2
    %v641 = vadd.f32 %v639, %v640
    %v642 = vrot.slane %v641, 1
    %v643 = vadd.f32 %v641, %v642
    %v644 = vmul.f32 %v636, %v494
    %v645 = vmul.f32 %v643, %v494
    %v646 = vsub.f32 %v627, %v644
    %v647 = vsub.f32 %v628, %v645
    %v648 = vmul.f32 %v646, %v646
    %v649 = vmul.f32 %v647, %v647
    %v650 = vsel %vm629, %v648, 0.0
    %v651 = vrot.slane %v650, 4
    %v652 = vadd.f32 %v650, %v651
    %v653 = vrot.slane %v652, 2
    %v654 = vadd.f32 %v652, %v653
    %v655 = vrot.slane %v654, 1
    %v656 = vadd.f32 %v654, %v655
    %v657 = vsel %vm629, %v649, 0.0
    %v658 = vrot.slane %v657, 4
    %v659 = vadd.f32 %v657, %v658
    %v660 = vrot.slane %v659, 2
    %v661 = vadd.f32 %v659, %v660
    %v662 = vrot.slane %v661, 1
    %v663 = vadd.f32 %v661, %v662
    %v664 = vmul.f32 %v656, %v494
    %v665 = vmul.f32 %v663, %v494
    %v666 = vadd.f32 %v664, 1e-05
    %v667 = vadd.f32 %v665, 1e-05
    %v668 = vrsqrt.pop %v666
    %v669 = vrsqrt.pop %v667
    %v670 = vmul.f32 %v646, %v668
    %v671 = vmul.f32 %v647, %v669
    %v673 = vlaneseq
    %v674 = vshrl.u32 %v673, 7
    %v675 = vsub.s32 0, %v674
    %v676 = vrot.slane %v366, %v675
    %v677 = vlaneseq
    %v678 = vshrl.u32 %v677, 7
    %v679 = vsub.s32 1, %v678
    %v680 = vrot.slane %v366, %v679
    %v683 = vmul.f32 %v670, %v676
    %v684 = vmul.f32 %v671, %v680
    %v686 = vlaneseq
    %v687 = vshrl.u32 %v686, 7
    %v688 = vsub.s32 0, %v687
    %v689 = vrot.slane %v368, %v688
    %v690 = vlaneseq
    %v691 = vshrl.u32 %v690, 7
    %v692 = vsub.s32 1, %v691
    %v693 = vrot.slane %v368, %v692
    %v696 = vadd.f32 %v683, %v689
    %v697 = vadd.f32 %v684, %v693
    %vm698 = vcmp.gt.f32.partialorder %v696, 0.0
    %vm699 = vcmp.gt.f32.partialorder %v697, 0.0
    %v700 = vmul.f32 %v696, 0.01
    %v701 = vmul.f32 %v697, 0.01
    %v702 = vsel %vm698, %v696, %v700
    %v703 = vsel %vm699, %v697, %v701
    %v704 = vpack.c.bf16 %v702, %v702
    %v721 = vunpack.c.l.b16 %v87
    %v722 = vunpack.c.l.b16 %v88
    %v723 = vunpack.c.l.b16 %v89
    %v724 = vunpack.c.l.b16 %v90
    %v725 = vunpack.c.l.b16 %v91
    %v726 = vunpack.c.l.b16 %v92
    %v727 = vunpack.c.l.b16 %v93
    %v728 = vunpack.c.l.b16 %v94
    %v729 = vunpack.c.l.b16 %v95
    %v730 = vunpack.c.l.b16 %v96
    %v731 = vunpack.c.l.b16 %v97
    %v732 = vunpack.c.l.b16 %v98
    %v733 = vunpack.c.l.b16 %v99
    %v734 = vunpack.c.l.b16 %v100
    %v735 = vunpack.c.l.b16 %v101
    %v736 = vunpack.c.l.b16 %v102
    %v737 = vpack.c.b16 %v722, %v721
    %v738 = vpack.c.b16 %v724, %v723
    %v739 = vpack.c.b16 %v726, %v725
    %v740 = vpack.c.b16 %v728, %v727
    %v741 = vpack.c.b16 %v730, %v729
    %v742 = vpack.c.b16 %v732, %v731
    %v743 = vpack.c.b16 %v734, %v733
    %v744 = vpack.c.b16 %v736, %v735
    %753 = vmatprep.subr.bf16.mxu0 0
    %754 = vmatpush1.bf16.msra.mxu0 %v737
    %755 = vmatprep.subr.bf16.mxu0 0
    %756 = vmatpush1.bf16.msra.mxu0 %v738
    %757 = vmatprep.subr.bf16.mxu0 0
    %758 = vmatpush1.bf16.msra.mxu0 %v739
    %759 = vmatprep.subr.bf16.mxu0 0
    %760 = vmatpush1.bf16.msra.mxu0 %v740
    %761 = vmatprep.subr.bf16.mxu0 0
    %762 = vmatpush1.bf16.msra.mxu0 %v741
    %763 = vmatprep.subr.bf16.mxu0 0
    %764 = vmatpush1.bf16.msra.mxu0 %v742
    %765 = vmatprep.subr.bf16.mxu0 0
    %766 = vmatpush1.bf16.msra.mxu0 %v743
    %767 = vmatprep.subr.bf16.mxu0 0
    %768 = vmatpush1.bf16.msra.mxu0 %v744
    %769 = vmatprep.subr.bf16.mxu0 0
    %770 = vmatpush1.bf16.msra.mxu0 0
    %771 = vmatprep.subr.bf16.mxu0 0
    %772 = vmatpush1.bf16.msra.mxu0 0
    %773 = vmatprep.subr.bf16.mxu0 0
    %774 = vmatpush1.bf16.msra.mxu0 0
    %775 = vmatprep.subr.bf16.mxu0 0
    %776 = vmatpush1.bf16.msra.mxu0 0
    %777 = vmatprep.subr.bf16.mxu0 0
    %778 = vmatpush1.bf16.msra.mxu0 0
    %779 = vmatprep.subr.bf16.mxu0 0
    %780 = vmatpush1.bf16.msra.mxu0 0
    %781 = vmatprep.subr.bf16.mxu0 0
    %782 = vmatpush1.bf16.msra.mxu0 0
    %783 = vmatprep.subr.bf16.mxu0 0
    %784 = vmatpush1.bf16.msra.mxu0 0
    %785 = vmatprep.mubr.bf16.mxu0 0
    %786 = vmatmul.mubr.bf16.gmra.mrb[0].mxu0 %v704
    %v787 = vpop.f32.mrb[0].mxu0
    %v788 = vadd.f32 0.0, %v787
    %v789 = vpop.f32.mrb[0].mxu0
    %v790 = vpop.f32.mrb[0].mxu0
    %v791 = vpop.f32.mrb[0].mxu0
    %792 = vdwg.mxu0
    %v793 = vpack.c.bf16 %v703, %v703
    %v810 = vunpack.c.l.b16 %v103
    %v811 = vunpack.c.l.b16 %v104
    %v812 = vunpack.c.l.b16 %v105
    %v813 = vunpack.c.l.b16 %v106
    %v814 = vunpack.c.l.b16 %v107
    %v815 = vunpack.c.l.b16 %v108
    %v816 = vunpack.c.l.b16 %v109
    %v817 = vunpack.c.l.b16 %v110
    %v818 = vunpack.c.l.b16 %v111
    %v819 = vunpack.c.l.b16 %v112
    %v820 = vunpack.c.l.b16 %v113
    %v821 = vunpack.c.l.b16 %v114
    %v822 = vunpack.c.l.b16 %v115
    %v823 = vunpack.c.l.b16 %v116
    %v824 = vunpack.c.l.b16 %v117
    %v825 = vunpack.c.l.b16 %v118
    %v826 = vpack.c.b16 %v811, %v810
    %v827 = vpack.c.b16 %v813, %v812
    %v828 = vpack.c.b16 %v815, %v814
    %v829 = vpack.c.b16 %v817, %v816
    %v830 = vpack.c.b16 %v819, %v818
    %v831 = vpack.c.b16 %v821, %v820
    %v832 = vpack.c.b16 %v823, %v822
    %v833 = vpack.c.b16 %v825, %v824
    %842 = vmatprep.subr.bf16.mxu0 0
    %843 = vmatpush1.bf16.msra.mxu0 %v826
    %844 = vmatprep.subr.bf16.mxu0 0
    %845 = vmatpush1.bf16.msra.mxu0 %v827
    %846 = vmatprep.subr.bf16.mxu0 0
    %847 = vmatpush1.bf16.msra.mxu0 %v828
    %848 = vmatprep.subr.bf16.mxu0 0
    %849 = vmatpush1.bf16.msra.mxu0 %v829
    %850 = vmatprep.subr.bf16.mxu0 0
    %851 = vmatpush1.bf16.msra.mxu0 %v830
    %852 = vmatprep.subr.bf16.mxu0 0
    %853 = vmatpush1.bf16.msra.mxu0 %v831
    %854 = vmatprep.subr.bf16.mxu0 0
    %855 = vmatpush1.bf16.msra.mxu0 %v832
    %856 = vmatprep.subr.bf16.mxu0 0
    %857 = vmatpush1.bf16.msra.mxu0 %v833
    %858 = vmatprep.subr.bf16.mxu0 0
    %859 = vmatpush1.bf16.msra.mxu0 0
    %860 = vmatprep.subr.bf16.mxu0 0
    %861 = vmatpush1.bf16.msra.mxu0 0
    %862 = vmatprep.subr.bf16.mxu0 0
    %863 = vmatpush1.bf16.msra.mxu0 0
    %864 = vmatprep.subr.bf16.mxu0 0
    %865 = vmatpush1.bf16.msra.mxu0 0
    %866 = vmatprep.subr.bf16.mxu0 0
    %867 = vmatpush1.bf16.msra.mxu0 0
    %868 = vmatprep.subr.bf16.mxu0 0
    %869 = vmatpush1.bf16.msra.mxu0 0
    %870 = vmatprep.subr.bf16.mxu0 0
    %871 = vmatpush1.bf16.msra.mxu0 0
    %872 = vmatprep.subr.bf16.mxu0 0
    %873 = vmatpush1.bf16.msra.mxu0 0
    %874 = vmatprep.mubr.bf16.mxu0 0
    %875 = vmatmul.mubr.bf16.gmra.mrb[0].mxu0 %v793
    %v876 = vpop.f32.mrb[0].mxu0
    %v877 = vadd.f32 0.0, %v876
    %v878 = vpop.f32.mrb[0].mxu0
    %v879 = vpop.f32.mrb[0].mxu0
    %v880 = vpop.f32.mrb[0].mxu0
    %881 = vdwg.mxu0
    %v883 = vlaneseq
    %v884 = vshrl.u32 %v883, 7
    %v885 = vsub.s32 0, %v884
    %v886 = vrot.slane %v370, %v885
    %v887 = vlaneseq
    %v888 = vshrl.u32 %v887, 7
    %v889 = vsub.s32 1, %v888
    %v890 = vrot.slane %v370, %v889
    %v893 = vadd.f32 %v788, %v886
    %v894 = vadd.f32 %v877, %v890
    %v895 = vsel %vm629, %v893, 0.0
    %v896 = vrot.slane %v895, 4
    %v897 = vadd.f32 %v895, %v896
    %v898 = vrot.slane %v897, 2
    %v899 = vadd.f32 %v897, %v898
    %v900 = vrot.slane %v899, 1
    %v901 = vadd.f32 %v899, %v900
    %v902 = vsel %vm629, %v894, 0.0
    %v903 = vrot.slane %v902, 4
    %v904 = vadd.f32 %v902, %v903
    %v905 = vrot.slane %v904, 2
    %v906 = vadd.f32 %v904, %v905
    %v907 = vrot.slane %v906, 1
    %v908 = vadd.f32 %v906, %v907
    %v909 = vmul.f32 %v901, %v494
    %v910 = vmul.f32 %v908, %v494
    %v911 = vsub.f32 %v893, %v909
    %v912 = vsub.f32 %v894, %v910
    %v913 = vmul.f32 %v911, %v911
    %v914 = vmul.f32 %v912, %v912
    %v915 = vsel %vm629, %v913, 0.0
    %v916 = vrot.slane %v915, 4
    %v917 = vadd.f32 %v915, %v916
    %v918 = vrot.slane %v917, 2
    %v919 = vadd.f32 %v917, %v918
    %v920 = vrot.slane %v919, 1
    %v921 = vadd.f32 %v919, %v920
    %v922 = vsel %vm629, %v914, 0.0
    %v923 = vrot.slane %v922, 4
    %v924 = vadd.f32 %v922, %v923
    %v925 = vrot.slane %v924, 2
    %v926 = vadd.f32 %v924, %v925
    %v927 = vrot.slane %v926, 1
    %v928 = vadd.f32 %v926, %v927
    %v929 = vmul.f32 %v921, %v494
    %v930 = vmul.f32 %v928, %v494
    %v931 = vadd.f32 %v929, 1e-05
    %v932 = vadd.f32 %v930, 1e-05
    %v933 = vrsqrt.pop %v931
    %v934 = vrsqrt.pop %v932
    %v935 = vmul.f32 %v911, %v933
    %v936 = vmul.f32 %v912, %v934
    %v938 = vlaneseq
    %v939 = vshrl.u32 %v938, 7
    %v940 = vsub.s32 0, %v939
    %v941 = vrot.slane %v372, %v940
    %v942 = vlaneseq
    %v943 = vshrl.u32 %v942, 7
    %v944 = vsub.s32 1, %v943
    %v945 = vrot.slane %v372, %v944
    %v948 = vmul.f32 %v935, %v941
    %v949 = vmul.f32 %v936, %v945
    %v951 = vlaneseq
    %v952 = vshrl.u32 %v951, 7
    %v953 = vsub.s32 0, %v952
    %v954 = vrot.slane %v374, %v953
    %v955 = vlaneseq
    %v956 = vshrl.u32 %v955, 7
    %v957 = vsub.s32 1, %v956
    %v958 = vrot.slane %v374, %v957
    %v961 = vadd.f32 %v948, %v954
    %v962 = vadd.f32 %v949, %v958
    %vm963 = vcmp.gt.f32.partialorder %v961, 0.0
    %vm964 = vcmp.gt.f32.partialorder %v962, 0.0
    %v965 = vmul.f32 %v961, 0.01
    %v966 = vmul.f32 %v962, 0.01
    %v967 = vsel %vm963, %v961, %v965
    %v968 = vsel %vm964, %v962, %v966
    %v969 = vpack.c.bf16 %v967, %v967
    %v986 = vunpack.c.l.b16 %v67
    %v987 = vunpack.c.l.b16 %v68
    %v988 = vunpack.c.l.b16 %v69
    %v989 = vunpack.c.l.b16 %v70
    %v990 = vunpack.c.l.b16 %v71
    %v991 = vunpack.c.l.b16 %v72
    %v992 = vunpack.c.l.b16 %v73
    %v993 = vunpack.c.l.b16 %v74
    %v994 = vunpack.c.l.b16 %v75
    %v995 = vunpack.c.l.b16 %v76
    %v996 = vunpack.c.l.b16 %v77
    %v997 = vunpack.c.l.b16 %v78
    %v998 = vunpack.c.l.b16 %v79
    %v999 = vunpack.c.l.b16 %v80
    %v1000 = vunpack.c.l.b16 %v81
    %v1001 = vunpack.c.l.b16 %v82
    %v1002 = vpack.c.b16 %v987, %v986
    %v1003 = vpack.c.b16 %v989, %v988
    %v1004 = vpack.c.b16 %v991, %v990
    %v1005 = vpack.c.b16 %v993, %v992
    %v1006 = vpack.c.b16 %v995, %v994
    %v1007 = vpack.c.b16 %v997, %v996
    %v1008 = vpack.c.b16 %v999, %v998
    %v1009 = vpack.c.b16 %v1001, %v1000
    %1018 = vmatprep.subr.bf16.mxu0 0
    %1019 = vmatpush1.bf16.msra.mxu0 %v1002
    %1020 = vmatprep.subr.bf16.mxu0 0
    %1021 = vmatpush1.bf16.msra.mxu0 %v1003
    %1022 = vmatprep.subr.bf16.mxu0 0
    %1023 = vmatpush1.bf16.msra.mxu0 %v1004
    %1024 = vmatprep.subr.bf16.mxu0 0
    %1025 = vmatpush1.bf16.msra.mxu0 %v1005
    %1026 = vmatprep.subr.bf16.mxu0 0
    %1027 = vmatpush1.bf16.msra.mxu0 %v1006
    %1028 = vmatprep.subr.bf16.mxu0 0
    %1029 = vmatpush1.bf16.msra.mxu0 %v1007
    %1030 = vmatprep.subr.bf16.mxu0 0
    %1031 = vmatpush1.bf16.msra.mxu0 %v1008
    %1032 = vmatprep.subr.bf16.mxu0 0
    %1033 = vmatpush1.bf16.msra.mxu0 %v1009
    %1034 = vmatprep.subr.bf16.mxu0 0
    %1035 = vmatpush1.bf16.msra.mxu0 0
    %1036 = vmatprep.subr.bf16.mxu0 0
    %1037 = vmatpush1.bf16.msra.mxu0 0
    %1038 = vmatprep.subr.bf16.mxu0 0
    %1039 = vmatpush1.bf16.msra.mxu0 0
    %1040 = vmatprep.subr.bf16.mxu0 0
    %1041 = vmatpush1.bf16.msra.mxu0 0
    %1042 = vmatprep.subr.bf16.mxu0 0
    %1043 = vmatpush1.bf16.msra.mxu0 0
    %1044 = vmatprep.subr.bf16.mxu0 0
    %1045 = vmatpush1.bf16.msra.mxu0 0
    %1046 = vmatprep.subr.bf16.mxu0 0
    %1047 = vmatpush1.bf16.msra.mxu0 0
    %1048 = vmatprep.subr.bf16.mxu0 0
    %1049 = vmatpush1.bf16.msra.mxu0 0
    %1050 = vmatprep.mubr.bf16.mxu0 0
    %1051 = vmatmul.mubr.bf16.gmra.mrb[0].mxu0 %v969
    %v1052 = vpop.f32.mrb[0].mxu0
    %v1053 = vadd.f32 0.0, %v1052
    %v1054 = vpop.f32.mrb[0].mxu0
    %v1055 = vpop.f32.mrb[0].mxu0
    %v1056 = vpop.f32.mrb[0].mxu0
    %1057 = vdwg.mxu0
    %v1058 = vpack.c.bf16 %v968, %v968
    %1059 = vrot.lane.b32.xlu0 %v1002, 127
    %v1060 = vpop.permute.xlu0 %1059
    %1061 = vrot.lane.b32.xlu0 %v1003, 127
    %v1062 = vpop.permute.xlu0 %1061
    %1063 = vrot.lane.b32.xlu0 %v1004, 127
    %v1064 = vpop.permute.xlu0 %1063
    %1065 = vrot.lane.b32.xlu0 %v1005, 127
    %v1066 = vpop.permute.xlu0 %1065
    %1067 = vrot.lane.b32.xlu0 %v1006, 127
    %v1068 = vpop.permute.xlu0 %1067
    %1069 = vrot.lane.b32.xlu0 %v1007, 127
    %v1070 = vpop.permute.xlu0 %1069
    %1071 = vrot.lane.b32.xlu0 %v1008, 127
    %v1072 = vpop.permute.xlu0 %1071
    %1073 = vrot.lane.b32.xlu0 %v1009, 127
    %v1074 = vpop.permute.xlu0 %1073
    %1083 = vmatprep.subr.bf16.mxu0 0
    %1084 = vmatpush1.bf16.msra.mxu0 %v1060
    %1085 = vmatprep.subr.bf16.mxu0 0
    %1086 = vmatpush1.bf16.msra.mxu0 %v1062
    %1087 = vmatprep.subr.bf16.mxu0 0
    %1088 = vmatpush1.bf16.msra.mxu0 %v1064
    %1089 = vmatprep.subr.bf16.mxu0 0
    %1090 = vmatpush1.bf16.msra.mxu0 %v1066
    %1091 = vmatprep.subr.bf16.mxu0 0
    %1092 = vmatpush1.bf16.msra.mxu0 %v1068
    %1093 = vmatprep.subr.bf16.mxu0 0
    %1094 = vmatpush1.bf16.msra.mxu0 %v1070
    %1095 = vmatprep.subr.bf16.mxu0 0
    %1096 = vmatpush1.bf16.msra.mxu0 %v1072
    %1097 = vmatprep.subr.bf16.mxu0 0
    %1098 = vmatpush1.bf16.msra.mxu0 %v1074
    %1099 = vmatprep.subr.bf16.mxu0 0
    %1100 = vmatpush1.bf16.msra.mxu0 0
    %1101 = vmatprep.subr.bf16.mxu0 0
    %1102 = vmatpush1.bf16.msra.mxu0 0
    %1103 = vmatprep.subr.bf16.mxu0 0
    %1104 = vmatpush1.bf16.msra.mxu0 0
    %1105 = vmatprep.subr.bf16.mxu0 0
    %1106 = vmatpush1.bf16.msra.mxu0 0
    %1107 = vmatprep.subr.bf16.mxu0 0
    %1108 = vmatpush1.bf16.msra.mxu0 0
    %1109 = vmatprep.subr.bf16.mxu0 0
    %1110 = vmatpush1.bf16.msra.mxu0 0
    %1111 = vmatprep.subr.bf16.mxu0 0
    %1112 = vmatpush1.bf16.msra.mxu0 0
    %1113 = vmatprep.subr.bf16.mxu0 0
    %1114 = vmatpush1.bf16.msra.mxu0 0
    %1115 = vmatprep.mubr.bf16.mxu0 0
    %1116 = vmatmul.mubr.bf16.gmra.mrb[0].mxu0 %v1058
    %v1117 = vpop.f32.mrb[0].mxu0
    %v1118 = vadd.f32 0.0, %v1117
    %v1119 = vpop.f32.mrb[0].mxu0
    %v1120 = vpop.f32.mrb[0].mxu0
    %v1121 = vpop.f32.mrb[0].mxu0
    %1122 = vdwg.mxu0
    %1124 = vrot.lane.b32.xlu0 %v1118, 1
    %v1125 = vpop.permute.xlu0 %1124
    %v1127 = vsel %vm284, %v1053, %v1125
    %v1128 = vadd.f32 %v1127, %v375
    %vm1129 = vcmask 11264
    %1130 = vst.msk [vmem:[%s8] sm:$0xf] %vm1129, %v1128
    // Predicated region
    $region38: #{tpu_custom_call.1} parent=1 // pred_check
      _
    $region39: #{tpu_custom_call.1} parent=1 // pred_check_branch
      %1132 = sbr.rel (0) target = $region41
    $region40: #{tpu_custom_call.1} parent=1 // pred_region
      _
    $region41: #{tpu_custom_call.1} parent=1 // pred_fallthru
      _
    // Predicated region
    $region42: #{tpu_custom_call.1} parent=1 // pred_check
      _
    $region43: #{tpu_custom_call.1} parent=1 // pred_check_branch
      %1134 = sbr.rel (0) target = $region45
    $region44: #{tpu_custom_call.1} parent=1 // pred_region
      _
    $region45: #{tpu_custom_call.1} parent=1 // pred_fallthru
      _
    // Predicated region
    $region46: #{tpu_custom_call.1} parent=1 // pred_check
      _
    $region47: #{tpu_custom_call.1} parent=1 // pred_check_branch
      %1136 = sbr.rel (0) target = $region49
    $region48: #{tpu_custom_call.1} parent=1 // pred_region
      _
    $region49: #{tpu_custom_call.1} parent=1 // pred_fallthru
      _
    // Predicated region
    $region50: #{tpu_custom_call.1} parent=1 // pred_check
      _
    $region51: #{tpu_custom_call.1} parent=1 // pred_check_branch
      %1138 = sbr.rel (0) target = $region53
    $region52: #{tpu_custom_call.1} parent=1 // pred_region
      _
    $region53: #{tpu_custom_call.1} parent=1 // pred_fallthru
      _
    %1139 = vsyncpa [#allocation3], 1
    %1140 = vsyncpa [#allocation5], 1

</llo_original>
